<compile_context>
chip_gen: v6e
topology: v6e:2x2x1
jax: 0.10.0
libtpu: 0.0.40
codegen_flags: <defaults>
</compile_context>

<pallas_src>
import jax
import jax.numpy as jnp
from jax import lax
from jax.experimental import pallas as pl
from jax.experimental.pallas import tpu as pltpu


def _round_up(n, m):
    return ((n + m - 1) // m) * m


def _retinex_partial_kernel(x_ref, y_ref, rl_ref, rh_ref, il_ref, ih_ref,
                            id_ref, o_ref, gpad_ref, ipad_ref):
    H, W = il_ref.shape          # raw image tile
    Hp, Wp = gpad_ref.shape      # lane/sublane aligned padded canvas

    # Zero the padded scratch planes every image (cheap; robust under
    # megacore sharding of the batch axis, unlike a pid==0-gated init).
    gpad_ref[...] = jnp.zeros((Hp, Wp), jnp.float32)
    ipad_ref[...] = jnp.zeros((Hp, Wp), jnp.float32)

    def l1_sum(a, b):
        return jnp.sum(jnp.abs(a - b))

    # Data sits at the origin of the (Hp, Wp) canvas with >=2 zero rows at the
    # bottom and >=2 zero cols at the right, so circular rolls wrap onto zeros
    # and behave exactly like zero-padded shifts on the (H+1, W+1) gradient
    # block; every integrand vanishes on the padding, so full-plane SUMS are
    # exact (means recovered in the wrapper by the true element counts).
    def grad_x(t):               # |t[r, c] - t[r, c-1]|
        return jnp.abs(t - pltpu.roll(t, 1, 1))

    def grad_y(t):               # |t[r, c] - t[r-1, c]|
        return jnp.abs(t - pltpu.roll(t, 1, 0))

    def box3_sum(g):             # separable 3x3 box SUM (1/9 folded into exp)
        rs = g + pltpu.roll(g, 1, 1) + pltpu.roll(g, Wp - 1, 1)
        return rs + pltpu.roll(rs, 1, 0) + pltpu.roll(rs, Hp - 1, 0)

    def to_padded(scratch, val):  # place (H, W) data at the canvas origin
        scratch[0:H, 0:W] = val
        return scratch[...]

    # exp(-10 * avg_gradient(gray(r), dir)) for both directions.
    def smooth_weights(r_ref):
        gray = 0.299 * r_ref[0] + 0.587 * r_ref[1] + 0.114 * r_ref[2]
        gp = to_padded(gpad_ref, gray)
        wx = jnp.exp(box3_sum(grad_x(gp)) * (-10.0 / 9.0))
        wy = jnp.exp(box3_sum(grad_y(gp)) * (-10.0 / 9.0))
        return wx, wy

    def smooth_sum(i_ref, wx, wy):
        ip = to_padded(ipad_ref, i_ref[...])
        return jnp.sum(grad_x(ip) * wx + grad_y(ip) * wy)

    # --- smoothness terms (r_low weights shared by smooth_low & smooth_delta)
    wx_low, wy_low = smooth_weights(rl_ref)
    s_sm_low = smooth_sum(il_ref, wx_low, wy_low)
    s_sm_delta = smooth_sum(id_ref, wx_low, wy_low)
    wx_high, wy_high = smooth_weights(rh_ref)
    s_sm_high = smooth_sum(ih_ref, wx_high, wy_high)

    # --- L1 terms on the raw (unpadded) tiles; refs are re-read per term so
    # live ranges (and hence spills) stay small for large images.
    partial = (
        l1_sum(rl_ref[...] * il_ref[...], x_ref[...]),   # 0 recon_low
        l1_sum(rh_ref[...] * ih_ref[...], y_ref[...]),   # 1 recon_high
        l1_sum(rh_ref[...] * il_ref[...], x_ref[...]),   # 2 recon_mutual_low
        l1_sum(rl_ref[...] * ih_ref[...], y_ref[...]),   # 3 recon_mutual_high
        l1_sum(rl_ref[...], rh_ref[...]),                # 4 equal_r
        s_sm_low,                                        # 5 smooth_low
        s_sm_high,                                       # 6 smooth_high
        l1_sum(rl_ref[...] * id_ref[...], y_ref[...]),   # 7 relight
        s_sm_delta,                                      # 8 smooth_delta
    )

    # Pack the 9 scalars into the lane-dense (1, 128) output block.
    lane = lax.broadcasted_iota(jnp.int32, o_ref.shape, len(o_ref.shape) - 1)
    out = jnp.zeros(o_ref.shape, jnp.float32)
    for k, v in enumerate(partial):
        out = jnp.where(lane == k, v, out)
    o_ref[...] = out


def retinex_loss_pallas(x, y, r_low, r_high, i_low, i_high, i_delta):
    """Combined RetinexNet decomposition + enhancement loss (scalar)."""
    B, C, H, W = x.shape
    assert C == 3
    # Padded scratch canvas: data at the origin, >=2 zero rows / cols at the
    # bottom / right (gradient + 3x3 pool halo), sublane/lane aligned.
    Hp = _round_up(H + 2, 8)
    Wp = _round_up(W + 2, 128)

    img_spec = pl.BlockSpec((None, 3, H, W), lambda b: (b, 0, 0, 0))
    illum_spec = pl.BlockSpec((None, None, H, W), lambda b: (b, 0, 0, 0))

    partial = pl.pallas_call(
        _retinex_partial_kernel,
        out_shape=jax.ShapeDtypeStruct((B, 1, 128), jnp.float32),
        grid=(B,),
        in_specs=[img_spec, img_spec, img_spec, img_spec,
                  illum_spec, illum_spec, illum_spec],
        out_specs=pl.BlockSpec((None, 1, 128), lambda b: (b, 0, 0)),
        scratch_shapes=[pltpu.VMEM((Hp, Wp), jnp.float32),   # gray canvas
                        pltpu.VMEM((Hp, Wp), jnp.float32)],  # illum canvas
        compiler_params=pltpu.CompilerParams(
            dimension_semantics=("parallel",),
            vmem_limit_bytes=32 * 1024 * 1024),
    )(x, y, r_low, r_high, i_low, i_high, i_delta)

    sums = jnp.sum(partial[:, 0, :9], axis=0)        # (9,) batch totals
    n_l1 = float(B * 3 * H * W)                      # L1 terms: (B,3,H,W)
    n_sm = float(B * (H + 1) * (W + 1))              # smooth terms: (B,1,H+1,W+1)

    recon_low = sums[0] / n_l1
    recon_high = sums[1] / n_l1
    recon_mut_low = sums[2] / n_l1
    recon_mut_high = sums[3] / n_l1
    equal_r = sums[4] / n_l1
    sm_low = sums[5] / n_sm
    sm_high = sums[6] / n_sm
    relight = sums[7] / n_l1
    sm_delta = sums[8] / n_sm

    decom = (recon_low + recon_high
             + 0.001 * recon_mut_low + 0.001 * recon_mut_high
             + 0.1 * sm_low + 0.1 * sm_high + 0.01 * equal_r)
    enhance = relight + 3.0 * sm_delta
    return decom + enhance


# ----------------------- pure-JAX reference (for checking) -----------------
def _ref_gradient(t, direction):
    p = jnp.pad(t, ((0, 0), (0, 0), (1, 1), (1, 1)))
    Hp, Wp = p.shape[2], p.shape[3]
    if direction == "x":
        g = p[:, :, 1:Hp, 1:Wp] - p[:, :, 1:Hp, 0:Wp - 1]
    else:
        g = p[:, :, 1:Hp, 1:Wp] - p[:, :, 0:Hp - 1, 1:Wp]
    return jnp.abs(g)


def _ref_avg_pool3(g):
    p = jnp.pad(g, ((0, 0), (0, 0), (1, 1), (1, 1)))
    H1, W1 = g.shape[2], g.shape[3]
    s = sum(p[:, :, i:i + H1, j:j + W1] for i in range(3) for j in range(3))
    return s / 9.0


def _ref_smooth(i, r):
    gray = 0.299 * r[:, 0:1] + 0.587 * r[:, 1:2] + 0.114 * r[:, 2:3]
    grad = (_ref_gradient(i, "x")
            * jnp.exp(-10.0 * _ref_avg_pool3(_ref_gradient(gray, "x")))
            + _ref_gradient(i, "y")
            * jnp.exp(-10.0 * _ref_avg_pool3(_ref_gradient(gray, "y"))))
    return jnp.mean(grad)


def _ref_retinex_loss(x, y, r_low, r_high, i_low, i_high, i_delta):
    l1 = lambda a, b: jnp.mean(jnp.abs(a - b))
    decom = (l1(r_low * i_low, x) + l1(r_high * i_high, y)
             + 0.001 * l1(r_high * i_low, x) + 0.001 * l1(r_low * i_high, y)
             + 0.1 * _ref_smooth(i_low, r_low)
             + 0.1 * _ref_smooth(i_high, r_high)
             + 0.01 * l1(r_low, r_high))
    enhance = l1(r_low * i_delta, y) + 3.0 * _ref_smooth(i_delta, r_low)
    return decom + enhance


if __name__ == "__main__":
    key = jax.random.PRNGKey(0)
    B, H, W = 2, 16, 16
    ks = jax.random.split(key, 7)
    x = jax.random.uniform(ks[0], (B, 3, H, W), jnp.float32)
    y = jax.random.uniform(ks[1], (B, 3, H, W), jnp.float32)
    r_low = jax.random.uniform(ks[2], (B, 3, H, W), jnp.float32)
    r_high = jax.random.uniform(ks[3], (B, 3, H, W), jnp.float32)
    i_low = jax.random.uniform(ks[4], (B, 1, H, W), jnp.float32)
    i_high = jax.random.uniform(ks[5], (B, 1, H, W), jnp.float32)
    i_delta = jax.random.uniform(ks[6], (B, 1, H, W), jnp.float32)

    loss = jax.jit(retinex_loss_pallas)(x, y, r_low, r_high,
                                        i_low, i_high, i_delta)
    loss = jax.block_until_ready(loss)

    ref = _ref_retinex_loss(x, y, r_low, r_high, i_low, i_high, i_delta)
    assert jnp.allclose(loss, ref, rtol=1e-4, atol=1e-5), (float(loss),
                                                           float(ref))
    print("KERNEL_OK")
</pallas_src>

<mosaic_0001>
module attributes {stable_mosaic.version = 11 : i64} {
  func.func @_retinex_partial_kernel(%arg0: i32, %arg1: memref<1x3x16x16xf32, #tpu.memory_space<vmem>>, %arg2: memref<1x3x16x16xf32, #tpu.memory_space<vmem>>, %arg3: memref<1x3x16x16xf32, #tpu.memory_space<vmem>>, %arg4: memref<1x3x16x16xf32, #tpu.memory_space<vmem>>, %arg5: memref<1x1x16x16xf32, #tpu.memory_space<vmem>>, %arg6: memref<1x1x16x16xf32, #tpu.memory_space<vmem>>, %arg7: memref<1x1x16x16xf32, #tpu.memory_space<vmem>>, %arg8: memref<1x1x128xf32, #tpu.memory_space<vmem>>, %arg9: memref<24x128xf32, #tpu.memory_space<vmem>>, %arg10: memref<24x128xf32, #tpu.memory_space<vmem>>) attributes {dimension_semantics = [#tpu.dimension_semantics<parallel>], iteration_bounds = array<i64: 2>, scalar_prefetch = 0 : i64, scratch_operands = 2 : i64, tpu.core_type = #tpu.core_type<tc>, window_params = [{transform_indices = @transform_0, window_bounds = array<i64: 1, 3, 16, 16>}, {transform_indices = @transform_1, window_bounds = array<i64: 1, 3, 16, 16>}, {transform_indices = @transform_2, window_bounds = array<i64: 1, 3, 16, 16>}, {transform_indices = @transform_3, window_bounds = array<i64: 1, 3, 16, 16>}, {transform_indices = @transform_4, window_bounds = array<i64: 1, 1, 16, 16>}, {transform_indices = @transform_5, window_bounds = array<i64: 1, 1, 16, 16>}, {transform_indices = @transform_6, window_bounds = array<i64: 1, 1, 16, 16>}, {transform_indices = @transform_7, window_bounds = array<i64: 1, 1, 128>}]} {
    %cst = arith.constant 0.000000e+00 : f32
    %0 = vector.broadcast %cst : f32 to vector<24x128xf32>
    %c0 = arith.constant 0 : index
    %c0_0 = arith.constant 0 : index
    %1 = vector.load %arg9[%c0, %c0_0] : memref<24x128xf32, #tpu.memory_space<vmem>>, vector<24x128xf32>
    tpu.vector_store %arg9[%c0, %c0_0], %0 {strides = array<i32>} : memref<24x128xf32, #tpu.memory_space<vmem>>, vector<24x128xf32>,
    %cst_1 = arith.constant 0.000000e+00 : f32
    %2 = vector.broadcast %cst_1 : f32 to vector<24x128xf32>
    %c0_2 = arith.constant 0 : index
    %c0_3 = arith.constant 0 : index
    %3 = vector.load %arg10[%c0_2, %c0_3] : memref<24x128xf32, #tpu.memory_space<vmem>>, vector<24x128xf32>
    tpu.vector_store %arg10[%c0_2, %c0_3], %2 {strides = array<i32>} : memref<24x128xf32, #tpu.memory_space<vmem>>, vector<24x128xf32>,
    %c0_4 = arith.constant 0 : index
    %c0_5 = arith.constant 0 : index
    %c0_6 = arith.constant 0 : index
    %c0_7 = arith.constant 0 : index
    %4 = vector.load %arg3[%c0_4, %c0_5, %c0_6, %c0_7] : memref<1x3x16x16xf32, #tpu.memory_space<vmem>>, vector<1x1x16x16xf32>
    %5 = vector.shape_cast %4 : vector<1x1x16x16xf32> to vector<16x16xf32>
    %cst_8 = arith.constant 2.990000e-01 : f32
    %6 = vector.broadcast %cst_8 : f32 to vector<16x16xf32>
    %7 = arith.mulf %6, %5 : vector<16x16xf32>
    %c0_9 = arith.constant 0 : index
    %c1 = arith.constant 1 : index
    %c0_10 = arith.constant 0 : index
    %c0_11 = arith.constant 0 : index
    %8 = vector.load %arg3[%c0_9, %c1, %c0_10, %c0_11] : memref<1x3x16x16xf32, #tpu.memory_space<vmem>>, vector<1x1x16x16xf32>
    %9 = vector.shape_cast %8 : vector<1x1x16x16xf32> to vector<16x16xf32>
    %cst_12 = arith.constant 5.870000e-01 : f32
    %10 = vector.broadcast %cst_12 : f32 to vector<16x16xf32>
    %11 = arith.mulf %10, %9 : vector<16x16xf32>
    %12 = arith.addf %7, %11 : vector<16x16xf32>
    %c0_13 = arith.constant 0 : index
    %c2 = arith.constant 2 : index
    %c0_14 = arith.constant 0 : index
    %c0_15 = arith.constant 0 : index
    %13 = vector.load %arg3[%c0_13, %c2, %c0_14, %c0_15] : memref<1x3x16x16xf32, #tpu.memory_space<vmem>>, vector<1x1x16x16xf32>
    %14 = vector.shape_cast %13 : vector<1x1x16x16xf32> to vector<16x16xf32>
    %cst_16 = arith.constant 1.140000e-01 : f32
    %15 = vector.broadcast %cst_16 : f32 to vector<16x16xf32>
    %16 = arith.mulf %15, %14 : vector<16x16xf32>
    %17 = arith.addf %12, %16 : vector<16x16xf32>
    %c0_17 = arith.constant 0 : index
    %c0_18 = arith.constant 0 : index
    %18 = vector.load %arg9[%c0_17, %c0_18] : memref<24x128xf32, #tpu.memory_space<vmem>>, vector<16x16xf32>
    tpu.vector_store %arg9[%c0_17, %c0_18], %17 {strides = array<i32>} : memref<24x128xf32, #tpu.memory_space<vmem>>, vector<16x16xf32>,
    %c0_19 = arith.constant 0 : index
    %c0_20 = arith.constant 0 : index
    %19 = vector.load %arg9[%c0_19, %c0_20] : memref<24x128xf32, #tpu.memory_space<vmem>>, vector<24x128xf32>
    %c1_i32 = arith.constant 1 : i32
    %20 = tpu.dynamic_rotate %19 by %c1_i32 dim 1 : vector<24x128xf32>, i32 -> vector<24x128xf32>
    %21 = arith.subf %19, %20 : vector<24x128xf32>
    %22 = math.absf %21 : vector<24x128xf32>
    %c1_i32_21 = arith.constant 1 : i32
    %23 = tpu.dynamic_rotate %22 by %c1_i32_21 dim 1 : vector<24x128xf32>, i32 -> vector<24x128xf32>
    %24 = arith.addf %22, %23 : vector<24x128xf32>
    %c127_i32 = arith.constant 127 : i32
    %25 = tpu.dynamic_rotate %22 by %c127_i32 dim 1 : vector<24x128xf32>, i32 -> vector<24x128xf32>
    %26 = arith.addf %24, %25 : vector<24x128xf32>
    %c1_i32_22 = arith.constant 1 : i32
    %27 = tpu.dynamic_rotate %26 by %c1_i32_22 dim 0 : vector<24x128xf32>, i32 -> vector<24x128xf32>
    %28 = arith.addf %26, %27 : vector<24x128xf32>
    %c23_i32 = arith.constant 23 : i32
    %29 = tpu.dynamic_rotate %26 by %c23_i32 dim 0 : vector<24x128xf32>, i32 -> vector<24x128xf32>
    %30 = arith.addf %28, %29 : vector<24x128xf32>
    %cst_23 = arith.constant -1.11111116 : f32
    %31 = vector.broadcast %cst_23 : f32 to vector<24x128xf32>
    %32 = arith.mulf %30, %31 : vector<24x128xf32>
    %33 = math.exp %32 : vector<24x128xf32>
    %c1_i32_24 = arith.constant 1 : i32
    %34 = tpu.dynamic_rotate %19 by %c1_i32_24 dim 0 : vector<24x128xf32>, i32 -> vector<24x128xf32>
    %35 = arith.subf %19, %34 : vector<24x128xf32>
    %36 = math.absf %35 : vector<24x128xf32>
    %c1_i32_25 = arith.constant 1 : i32
    %37 = tpu.dynamic_rotate %36 by %c1_i32_25 dim 1 : vector<24x128xf32>, i32 -> vector<24x128xf32>
    %38 = arith.addf %36, %37 : vector<24x128xf32>
    %c127_i32_26 = arith.constant 127 : i32
    %39 = tpu.dynamic_rotate %36 by %c127_i32_26 dim 1 : vector<24x128xf32>, i32 -> vector<24x128xf32>
    %40 = arith.addf %38, %39 : vector<24x128xf32>
    %c1_i32_27 = arith.constant 1 : i32
    %41 = tpu.dynamic_rotate %40 by %c1_i32_27 dim 0 : vector<24x128xf32>, i32 -> vector<24x128xf32>
    %42 = arith.addf %40, %41 : vector<24x128xf32>
    %c23_i32_28 = arith.constant 23 : i32
    %43 = tpu.dynamic_rotate %40 by %c23_i32_28 dim 0 : vector<24x128xf32>, i32 -> vector<24x128xf32>
    %44 = arith.addf %42, %43 : vector<24x128xf32>
    %cst_29 = arith.constant -1.11111116 : f32
    %45 = vector.broadcast %cst_29 : f32 to vector<24x128xf32>
    %46 = arith.mulf %44, %45 : vector<24x128xf32>
    %47 = math.exp %46 : vector<24x128xf32>
    %c0_30 = arith.constant 0 : index
    %c0_31 = arith.constant 0 : index
    %c0_32 = arith.constant 0 : index
    %c0_33 = arith.constant 0 : index
    %48 = vector.load %arg5[%c0_30, %c0_31, %c0_32, %c0_33] : memref<1x1x16x16xf32, #tpu.memory_space<vmem>>, vector<1x1x16x16xf32>
    %49 = vector.shape_cast %48 : vector<1x1x16x16xf32> to vector<16x16xf32>
    %c0_34 = arith.constant 0 : index
    %c0_35 = arith.constant 0 : index
    %50 = vector.load %arg10[%c0_34, %c0_35] : memref<24x128xf32, #tpu.memory_space<vmem>>, vector<16x16xf32>
    tpu.vector_store %arg10[%c0_34, %c0_35], %49 {strides = array<i32>} : memref<24x128xf32, #tpu.memory_space<vmem>>, vector<16x16xf32>,
    %c0_36 = arith.constant 0 : index
    %c0_37 = arith.constant 0 : index
    %51 = vector.load %arg10[%c0_36, %c0_37] : memref<24x128xf32, #tpu.memory_space<vmem>>, vector<24x128xf32>
    %c1_i32_38 = arith.constant 1 : i32
    %52 = tpu.dynamic_rotate %51 by %c1_i32_38 dim 1 : vector<24x128xf32>, i32 -> vector<24x128xf32>
    %53 = arith.subf %51, %52 : vector<24x128xf32>
    %54 = math.absf %53 : vector<24x128xf32>
    %55 = arith.mulf %54, %33 : vector<24x128xf32>
    %c1_i32_39 = arith.constant 1 : i32
    %56 = tpu.dynamic_rotate %51 by %c1_i32_39 dim 0 : vector<24x128xf32>, i32 -> vector<24x128xf32>
    %57 = arith.subf %51, %56 : vector<24x128xf32>
    %58 = math.absf %57 : vector<24x128xf32>
    %59 = arith.mulf %58, %47 : vector<24x128xf32>
    %60 = arith.addf %55, %59 : vector<24x128xf32>
    %61 = vector.shape_cast %60 : vector<24x128xf32> to vector<1x24x128xf32>
    %cst_40 = arith.constant dense<0.000000e+00> : vector<1xf32>
    %62 = vector.multi_reduction <add>, %61, %cst_40 [1, 2] : vector<1x24x128xf32> to vector<1xf32>
    %63 = vector.shape_cast %62 : vector<1xf32> to vector<1x1x1xf32>
    %64 = vector.extract %63[0, 0, 0] : f32 from vector<1x1x1xf32>
    %c0_41 = arith.constant 0 : index
    %c0_42 = arith.constant 0 : index
    %c0_43 = arith.constant 0 : index
    %c0_44 = arith.constant 0 : index
    %65 = vector.load %arg7[%c0_41, %c0_42, %c0_43, %c0_44] : memref<1x1x16x16xf32, #tpu.memory_space<vmem>>, vector<1x1x16x16xf32>
    %66 = vector.shape_cast %65 : vector<1x1x16x16xf32> to vector<16x16xf32>
    %c0_45 = arith.constant 0 : index
    %c0_46 = arith.constant 0 : index
    %67 = vector.load %arg10[%c0_45, %c0_46] : memref<24x128xf32, #tpu.memory_space<vmem>>, vector<16x16xf32>
    tpu.vector_store %arg10[%c0_45, %c0_46], %66 {strides = array<i32>} : memref<24x128xf32, #tpu.memory_space<vmem>>, vector<16x16xf32>,
    %c0_47 = arith.constant 0 : index
    %c0_48 = arith.constant 0 : index
    %68 = vector.load %arg10[%c0_47, %c0_48] : memref<24x128xf32, #tpu.memory_space<vmem>>, vector<24x128xf32>
    %c1_i32_49 = arith.constant 1 : i32
    %69 = tpu.dynamic_rotate %68 by %c1_i32_49 dim 1 : vector<24x128xf32>, i32 -> vector<24x128xf32>
    %70 = arith.subf %68, %69 : vector<24x128xf32>
    %71 = math.absf %70 : vector<24x128xf32>
    %72 = arith.mulf %71, %33 : vector<24x128xf32>
    %c1_i32_50 = arith.constant 1 : i32
    %73 = tpu.dynamic_rotate %68 by %c1_i32_50 dim 0 : vector<24x128xf32>, i32 -> vector<24x128xf32>
    %74 = arith.subf %68, %73 : vector<24x128xf32>
    %75 = math.absf %74 : vector<24x128xf32>
    %76 = arith.mulf %75, %47 : vector<24x128xf32>
    %77 = arith.addf %72, %76 : vector<24x128xf32>
    %78 = vector.shape_cast %77 : vector<24x128xf32> to vector<1x24x128xf32>
    %cst_51 = arith.constant dense<0.000000e+00> : vector<1xf32>
    %79 = vector.multi_reduction <add>, %78, %cst_51 [1, 2] : vector<1x24x128xf32> to vector<1xf32>
    %80 = vector.shape_cast %79 : vector<1xf32> to vector<1x1x1xf32>
    %81 = vector.extract %80[0, 0, 0] : f32 from vector<1x1x1xf32>
    %c0_52 = arith.constant 0 : index
    %c0_53 = arith.constant 0 : index
    %c0_54 = arith.constant 0 : index
    %c0_55 = arith.constant 0 : index
    %82 = vector.load %arg4[%c0_52, %c0_53, %c0_54, %c0_55] : memref<1x3x16x16xf32, #tpu.memory_space<vmem>>, vector<1x1x16x16xf32>
    %83 = vector.shape_cast %82 : vector<1x1x16x16xf32> to vector<16x16xf32>
    %cst_56 = arith.constant 2.990000e-01 : f32
    %84 = vector.broadcast %cst_56 : f32 to vector<16x16xf32>
    %85 = arith.mulf %84, %83 : vector<16x16xf32>
    %c0_57 = arith.constant 0 : index
    %c1_58 = arith.constant 1 : index
    %c0_59 = arith.constant 0 : index
    %c0_60 = arith.constant 0 : index
    %86 = vector.load %arg4[%c0_57, %c1_58, %c0_59, %c0_60] : memref<1x3x16x16xf32, #tpu.memory_space<vmem>>, vector<1x1x16x16xf32>
    %87 = vector.shape_cast %86 : vector<1x1x16x16xf32> to vector<16x16xf32>
    %cst_61 = arith.constant 5.870000e-01 : f32
    %88 = vector.broadcast %cst_61 : f32 to vector<16x16xf32>
    %89 = arith.mulf %88, %87 : vector<16x16xf32>
    %90 = arith.addf %85, %89 : vector<16x16xf32>
    %c0_62 = arith.constant 0 : index
    %c2_63 = arith.constant 2 : index
    %c0_64 = arith.constant 0 : index
    %c0_65 = arith.constant 0 : index
    %91 = vector.load %arg4[%c0_62, %c2_63, %c0_64, %c0_65] : memref<1x3x16x16xf32, #tpu.memory_space<vmem>>, vector<1x1x16x16xf32>
    %92 = vector.shape_cast %91 : vector<1x1x16x16xf32> to vector<16x16xf32>
    %cst_66 = arith.constant 1.140000e-01 : f32
    %93 = vector.broadcast %cst_66 : f32 to vector<16x16xf32>
    %94 = arith.mulf %93, %92 : vector<16x16xf32>
    %95 = arith.addf %90, %94 : vector<16x16xf32>
    %c0_67 = arith.constant 0 : index
    %c0_68 = arith.constant 0 : index
    %96 = vector.load %arg9[%c0_67, %c0_68] : memref<24x128xf32, #tpu.memory_space<vmem>>, vector<16x16xf32>
    tpu.vector_store %arg9[%c0_67, %c0_68], %95 {strides = array<i32>} : memref<24x128xf32, #tpu.memory_space<vmem>>, vector<16x16xf32>,
    %c0_69 = arith.constant 0 : index
    %c0_70 = arith.constant 0 : index
    %97 = vector.load %arg9[%c0_69, %c0_70] : memref<24x128xf32, #tpu.memory_space<vmem>>, vector<24x128xf32>
    %c1_i32_71 = arith.constant 1 : i32
    %98 = tpu.dynamic_rotate %97 by %c1_i32_71 dim 1 : vector<24x128xf32>, i32 -> vector<24x128xf32>
    %99 = arith.subf %97, %98 : vector<24x128xf32>
    %100 = math.absf %99 : vector<24x128xf32>
    %c1_i32_72 = arith.constant 1 : i32
    %101 = tpu.dynamic_rotate %100 by %c1_i32_72 dim 1 : vector<24x128xf32>, i32 -> vector<24x128xf32>
    %102 = arith.addf %100, %101 : vector<24x128xf32>
    %c127_i32_73 = arith.constant 127 : i32
    %103 = tpu.dynamic_rotate %100 by %c127_i32_73 dim 1 : vector<24x128xf32>, i32 -> vector<24x128xf32>
    %104 = arith.addf %102, %103 : vector<24x128xf32>
    %c1_i32_74 = arith.constant 1 : i32
    %105 = tpu.dynamic_rotate %104 by %c1_i32_74 dim 0 : vector<24x128xf32>, i32 -> vector<24x128xf32>
    %106 = arith.addf %104, %105 : vector<24x128xf32>
    %c23_i32_75 = arith.constant 23 : i32
    %107 = tpu.dynamic_rotate %104 by %c23_i32_75 dim 0 : vector<24x128xf32>, i32 -> vector<24x128xf32>
    %108 = arith.addf %106, %107 : vector<24x128xf32>
    %cst_76 = arith.constant -1.11111116 : f32
    %109 = vector.broadcast %cst_76 : f32 to vector<24x128xf32>
    %110 = arith.mulf %108, %109 : vector<24x128xf32>
    %111 = math.exp %110 : vector<24x128xf32>
    %c1_i32_77 = arith.constant 1 : i32
    %112 = tpu.dynamic_rotate %97 by %c1_i32_77 dim 0 : vector<24x128xf32>, i32 -> vector<24x128xf32>
    %113 = arith.subf %97, %112 : vector<24x128xf32>
    %114 = math.absf %113 : vector<24x128xf32>
    %c1_i32_78 = arith.constant 1 : i32
    %115 = tpu.dynamic_rotate %114 by %c1_i32_78 dim 1 : vector<24x128xf32>, i32 -> vector<24x128xf32>
    %116 = arith.addf %114, %115 : vector<24x128xf32>
    %c127_i32_79 = arith.constant 127 : i32
    %117 = tpu.dynamic_rotate %114 by %c127_i32_79 dim 1 : vector<24x128xf32>, i32 -> vector<24x128xf32>
    %118 = arith.addf %116, %117 : vector<24x128xf32>
    %c1_i32_80 = arith.constant 1 : i32
    %119 = tpu.dynamic_rotate %118 by %c1_i32_80 dim 0 : vector<24x128xf32>, i32 -> vector<24x128xf32>
    %120 = arith.addf %118, %119 : vector<24x128xf32>
    %c23_i32_81 = arith.constant 23 : i32
    %121 = tpu.dynamic_rotate %118 by %c23_i32_81 dim 0 : vector<24x128xf32>, i32 -> vector<24x128xf32>
    %122 = arith.addf %120, %121 : vector<24x128xf32>
    %cst_82 = arith.constant -1.11111116 : f32
    %123 = vector.broadcast %cst_82 : f32 to vector<24x128xf32>
    %124 = arith.mulf %122, %123 : vector<24x128xf32>
    %125 = math.exp %124 : vector<24x128xf32>
    %c0_83 = arith.constant 0 : index
    %c0_84 = arith.constant 0 : index
    %c0_85 = arith.constant 0 : index
    %c0_86 = arith.constant 0 : index
    %126 = vector.load %arg6[%c0_83, %c0_84, %c0_85, %c0_86] : memref<1x1x16x16xf32, #tpu.memory_space<vmem>>, vector<1x1x16x16xf32>
    %127 = vector.shape_cast %126 : vector<1x1x16x16xf32> to vector<16x16xf32>
    %c0_87 = arith.constant 0 : index
    %c0_88 = arith.constant 0 : index
    %128 = vector.load %arg10[%c0_87, %c0_88] : memref<24x128xf32, #tpu.memory_space<vmem>>, vector<16x16xf32>
    tpu.vector_store %arg10[%c0_87, %c0_88], %127 {strides = array<i32>} : memref<24x128xf32, #tpu.memory_space<vmem>>, vector<16x16xf32>,
    %c0_89 = arith.constant 0 : index
    %c0_90 = arith.constant 0 : index
    %129 = vector.load %arg10[%c0_89, %c0_90] : memref<24x128xf32, #tpu.memory_space<vmem>>, vector<24x128xf32>
    %c1_i32_91 = arith.constant 1 : i32
    %130 = tpu.dynamic_rotate %129 by %c1_i32_91 dim 1 : vector<24x128xf32>, i32 -> vector<24x128xf32>
    %131 = arith.subf %129, %130 : vector<24x128xf32>
    %132 = math.absf %131 : vector<24x128xf32>
    %133 = arith.mulf %132, %111 : vector<24x128xf32>
    %c1_i32_92 = arith.constant 1 : i32
    %134 = tpu.dynamic_rotate %129 by %c1_i32_92 dim 0 : vector<24x128xf32>, i32 -> vector<24x128xf32>
    %135 = arith.subf %129, %134 : vector<24x128xf32>
    %136 = math.absf %135 : vector<24x128xf32>
    %137 = arith.mulf %136, %125 : vector<24x128xf32>
    %138 = arith.addf %133, %137 : vector<24x128xf32>
    %139 = vector.shape_cast %138 : vector<24x128xf32> to vector<1x24x128xf32>
    %cst_93 = arith.constant dense<0.000000e+00> : vector<1xf32>
    %140 = vector.multi_reduction <add>, %139, %cst_93 [1, 2] : vector<1x24x128xf32> to vector<1xf32>
    %141 = vector.shape_cast %140 : vector<1xf32> to vector<1x1x1xf32>
    %142 = vector.extract %141[0, 0, 0] : f32 from vector<1x1x1xf32>
    %c0_94 = arith.constant 0 : index
    %c0_95 = arith.constant 0 : index
    %c0_96 = arith.constant 0 : index
    %c0_97 = arith.constant 0 : index
    %143 = vector.load %arg3[%c0_94, %c0_95, %c0_96, %c0_97] : memref<1x3x16x16xf32, #tpu.memory_space<vmem>>, vector<1x3x16x16xf32>
    %144 = vector.shape_cast %143 : vector<1x3x16x16xf32> to vector<3x16x16xf32>
    %c0_98 = arith.constant 0 : index
    %c0_99 = arith.constant 0 : index
    %c0_100 = arith.constant 0 : index
    %c0_101 = arith.constant 0 : index
    %145 = vector.load %arg5[%c0_98, %c0_99, %c0_100, %c0_101] : memref<1x1x16x16xf32, #tpu.memory_space<vmem>>, vector<1x1x16x16xf32>
    %146 = vector.shape_cast %145 : vector<1x1x16x16xf32> to vector<16x16xf32>
    %147 = vector.shape_cast %146 : vector<16x16xf32> to vector<1x16x16xf32>
    %148 = vector.broadcast %147 : vector<1x16x16xf32> to vector<3x16x16xf32>
    %149 = arith.mulf %144, %148 : vector<3x16x16xf32>
    %c0_102 = arith.constant 0 : index
    %c0_103 = arith.constant 0 : index
    %c0_104 = arith.constant 0 : index
    %c0_105 = arith.constant 0 : index
    %150 = vector.load %arg1[%c0_102, %c0_103, %c0_104, %c0_105] : memref<1x3x16x16xf32, #tpu.memory_space<vmem>>, vector<1x3x16x16xf32>
    %151 = vector.shape_cast %150 : vector<1x3x16x16xf32> to vector<3x16x16xf32>
    %152 = arith.subf %149, %151 : vector<3x16x16xf32>
    %153 = math.absf %152 : vector<3x16x16xf32>
    %154 = vector.shape_cast %153 : vector<3x16x16xf32> to vector<1x3x16x16xf32>
    %cst_106 = arith.constant dense<0.000000e+00> : vector<1xf32>
    %155 = vector.multi_reduction <add>, %154, %cst_106 [1, 2, 3] : vector<1x3x16x16xf32> to vector<1xf32>
    %156 = vector.shape_cast %155 : vector<1xf32> to vector<1x1x1x1xf32>
    %157 = vector.extract %156[0, 0, 0, 0] : f32 from vector<1x1x1x1xf32>
    %c0_107 = arith.constant 0 : index
    %c0_108 = arith.constant 0 : index
    %c0_109 = arith.constant 0 : index
    %c0_110 = arith.constant 0 : index
    %158 = vector.load %arg4[%c0_107, %c0_108, %c0_109, %c0_110] : memref<1x3x16x16xf32, #tpu.memory_space<vmem>>, vector<1x3x16x16xf32>
    %159 = vector.shape_cast %158 : vector<1x3x16x16xf32> to vector<3x16x16xf32>
    %c0_111 = arith.constant 0 : index
    %c0_112 = arith.constant 0 : index
    %c0_113 = arith.constant 0 : index
    %c0_114 = arith.constant 0 : index
    %160 = vector.load %arg6[%c0_111, %c0_112, %c0_113, %c0_114] : memref<1x1x16x16xf32, #tpu.memory_space<vmem>>, vector<1x1x16x16xf32>
    %161 = vector.shape_cast %160 : vector<1x1x16x16xf32> to vector<16x16xf32>
    %162 = vector.shape_cast %161 : vector<16x16xf32> to vector<1x16x16xf32>
    %163 = vector.broadcast %162 : vector<1x16x16xf32> to vector<3x16x16xf32>
    %164 = arith.mulf %159, %163 : vector<3x16x16xf32>
    %c0_115 = arith.constant 0 : index
    %c0_116 = arith.constant 0 : index
    %c0_117 = arith.constant 0 : index
    %c0_118 = arith.constant 0 : index
    %165 = vector.load %arg2[%c0_115, %c0_116, %c0_117, %c0_118] : memref<1x3x16x16xf32, #tpu.memory_space<vmem>>, vector<1x3x16x16xf32>
    %166 = vector.shape_cast %165 : vector<1x3x16x16xf32> to vector<3x16x16xf32>
    %167 = arith.subf %164, %166 : vector<3x16x16xf32>
    %168 = math.absf %167 : vector<3x16x16xf32>
    %169 = vector.shape_cast %168 : vector<3x16x16xf32> to vector<1x3x16x16xf32>
    %cst_119 = arith.constant dense<0.000000e+00> : vector<1xf32>
    %170 = vector.multi_reduction <add>, %169, %cst_119 [1, 2, 3] : vector<1x3x16x16xf32> to vector<1xf32>
    %171 = vector.shape_cast %170 : vector<1xf32> to vector<1x1x1x1xf32>
    %172 = vector.extract %171[0, 0, 0, 0] : f32 from vector<1x1x1x1xf32>
    %c0_120 = arith.constant 0 : index
    %c0_121 = arith.constant 0 : index
    %c0_122 = arith.constant 0 : index
    %c0_123 = arith.constant 0 : index
    %173 = vector.load %arg4[%c0_120, %c0_121, %c0_122, %c0_123] : memref<1x3x16x16xf32, #tpu.memory_space<vmem>>, vector<1x3x16x16xf32>
    %174 = vector.shape_cast %173 : vector<1x3x16x16xf32> to vector<3x16x16xf32>
    %c0_124 = arith.constant 0 : index
    %c0_125 = arith.constant 0 : index
    %c0_126 = arith.constant 0 : index
    %c0_127 = arith.constant 0 : index
    %175 = vector.load %arg5[%c0_124, %c0_125, %c0_126, %c0_127] : memref<1x1x16x16xf32, #tpu.memory_space<vmem>>, vector<1x1x16x16xf32>
    %176 = vector.shape_cast %175 : vector<1x1x16x16xf32> to vector<16x16xf32>
    %177 = vector.shape_cast %176 : vector<16x16xf32> to vector<1x16x16xf32>
    %178 = vector.broadcast %177 : vector<1x16x16xf32> to vector<3x16x16xf32>
    %179 = arith.mulf %174, %178 : vector<3x16x16xf32>
    %c0_128 = arith.constant 0 : index
    %c0_129 = arith.constant 0 : index
    %c0_130 = arith.constant 0 : index
    %c0_131 = arith.constant 0 : index
    %180 = vector.load %arg1[%c0_128, %c0_129, %c0_130, %c0_131] : memref<1x3x16x16xf32, #tpu.memory_space<vmem>>, vector<1x3x16x16xf32>
    %181 = vector.shape_cast %180 : vector<1x3x16x16xf32> to vector<3x16x16xf32>
    %182 = arith.subf %179, %181 : vector<3x16x16xf32>
    %183 = math.absf %182 : vector<3x16x16xf32>
    %184 = vector.shape_cast %183 : vector<3x16x16xf32> to vector<1x3x16x16xf32>
    %cst_132 = arith.constant dense<0.000000e+00> : vector<1xf32>
    %185 = vector.multi_reduction <add>, %184, %cst_132 [1, 2, 3] : vector<1x3x16x16xf32> to vector<1xf32>
    %186 = vector.shape_cast %185 : vector<1xf32> to vector<1x1x1x1xf32>
    %187 = vector.extract %186[0, 0, 0, 0] : f32 from vector<1x1x1x1xf32>
    %c0_133 = arith.constant 0 : index
    %c0_134 = arith.constant 0 : index
    %c0_135 = arith.constant 0 : index
    %c0_136 = arith.constant 0 : index
    %188 = vector.load %arg3[%c0_133, %c0_134, %c0_135, %c0_136] : memref<1x3x16x16xf32, #tpu.memory_space<vmem>>, vector<1x3x16x16xf32>
    %189 = vector.shape_cast %188 : vector<1x3x16x16xf32> to vector<3x16x16xf32>
    %c0_137 = arith.constant 0 : index
    %c0_138 = arith.constant 0 : index
    %c0_139 = arith.constant 0 : index
    %c0_140 = arith.constant 0 : index
    %190 = vector.load %arg6[%c0_137, %c0_138, %c0_139, %c0_140] : memref<1x1x16x16xf32, #tpu.memory_space<vmem>>, vector<1x1x16x16xf32>
    %191 = vector.shape_cast %190 : vector<1x1x16x16xf32> to vector<16x16xf32>
    %192 = vector.shape_cast %191 : vector<16x16xf32> to vector<1x16x16xf32>
    %193 = vector.broadcast %192 : vector<1x16x16xf32> to vector<3x16x16xf32>
    %194 = arith.mulf %189, %193 : vector<3x16x16xf32>
    %c0_141 = arith.constant 0 : index
    %c0_142 = arith.constant 0 : index
    %c0_143 = arith.constant 0 : index
    %c0_144 = arith.constant 0 : index
    %195 = vector.load %arg2[%c0_141, %c0_142, %c0_143, %c0_144] : memref<1x3x16x16xf32, #tpu.memory_space<vmem>>, vector<1x3x16x16xf32>
    %196 = vector.shape_cast %195 : vector<1x3x16x16xf32> to vector<3x16x16xf32>
    %197 = arith.subf %194, %196 : vector<3x16x16xf32>
    %198 = math.absf %197 : vector<3x16x16xf32>
    %199 = vector.shape_cast %198 : vector<3x16x16xf32> to vector<1x3x16x16xf32>
    %cst_145 = arith.constant dense<0.000000e+00> : vector<1xf32>
    %200 = vector.multi_reduction <add>, %199, %cst_145 [1, 2, 3] : vector<1x3x16x16xf32> to vector<1xf32>
    %201 = vector.shape_cast %200 : vector<1xf32> to vector<1x1x1x1xf32>
    %202 = vector.extract %201[0, 0, 0, 0] : f32 from vector<1x1x1x1xf32>
    %c0_146 = arith.constant 0 : index
    %c0_147 = arith.constant 0 : index
    %c0_148 = arith.constant 0 : index
    %c0_149 = arith.constant 0 : index
    %203 = vector.load %arg3[%c0_146, %c0_147, %c0_148, %c0_149] : memref<1x3x16x16xf32, #tpu.memory_space<vmem>>, vector<1x3x16x16xf32>
    %204 = vector.shape_cast %203 : vector<1x3x16x16xf32> to vector<3x16x16xf32>
    %c0_150 = arith.constant 0 : index
    %c0_151 = arith.constant 0 : index
    %c0_152 = arith.constant 0 : index
    %c0_153 = arith.constant 0 : index
    %205 = vector.load %arg4[%c0_150, %c0_151, %c0_152, %c0_153] : memref<1x3x16x16xf32, #tpu.memory_space<vmem>>, vector<1x3x16x16xf32>
    %206 = vector.shape_cast %205 : vector<1x3x16x16xf32> to vector<3x16x16xf32>
    %207 = arith.subf %204, %206 : vector<3x16x16xf32>
    %208 = math.absf %207 : vector<3x16x16xf32>
    %209 = vector.shape_cast %208 : vector<3x16x16xf32> to vector<1x3x16x16xf32>
    %cst_154 = arith.constant dense<0.000000e+00> : vector<1xf32>
    %210 = vector.multi_reduction <add>, %209, %cst_154 [1, 2, 3] : vector<1x3x16x16xf32> to vector<1xf32>
    %211 = vector.shape_cast %210 : vector<1xf32> to vector<1x1x1x1xf32>
    %212 = vector.extract %211[0, 0, 0, 0] : f32 from vector<1x1x1x1xf32>
    %c0_155 = arith.constant 0 : index
    %c0_156 = arith.constant 0 : index
    %c0_157 = arith.constant 0 : index
    %c0_158 = arith.constant 0 : index
    %213 = vector.load %arg3[%c0_155, %c0_156, %c0_157, %c0_158] : memref<1x3x16x16xf32, #tpu.memory_space<vmem>>, vector<1x3x16x16xf32>
    %214 = vector.shape_cast %213 : vector<1x3x16x16xf32> to vector<3x16x16xf32>
    %c0_159 = arith.constant 0 : index
    %c0_160 = arith.constant 0 : index
    %c0_161 = arith.constant 0 : index
    %c0_162 = arith.constant 0 : index
    %215 = vector.load %arg7[%c0_159, %c0_160, %c0_161, %c0_162] : memref<1x1x16x16xf32, #tpu.memory_space<vmem>>, vector<1x1x16x16xf32>
    %216 = vector.shape_cast %215 : vector<1x1x16x16xf32> to vector<16x16xf32>
    %217 = vector.shape_cast %216 : vector<16x16xf32> to vector<1x16x16xf32>
    %218 = vector.broadcast %217 : vector<1x16x16xf32> to vector<3x16x16xf32>
    %219 = arith.mulf %214, %218 : vector<3x16x16xf32>
    %c0_163 = arith.constant 0 : index
    %c0_164 = arith.constant 0 : index
    %c0_165 = arith.constant 0 : index
    %c0_166 = arith.constant 0 : index
    %220 = vector.load %arg2[%c0_163, %c0_164, %c0_165, %c0_166] : memref<1x3x16x16xf32, #tpu.memory_space<vmem>>, vector<1x3x16x16xf32>
    %221 = vector.shape_cast %220 : vector<1x3x16x16xf32> to vector<3x16x16xf32>
    %222 = arith.subf %219, %221 : vector<3x16x16xf32>
    %223 = math.absf %222 : vector<3x16x16xf32>
    %224 = vector.shape_cast %223 : vector<3x16x16xf32> to vector<1x3x16x16xf32>
    %cst_167 = arith.constant dense<0.000000e+00> : vector<1xf32>
    %225 = vector.multi_reduction <add>, %224, %cst_167 [1, 2, 3] : vector<1x3x16x16xf32> to vector<1xf32>
    %226 = vector.shape_cast %225 : vector<1xf32> to vector<1x1x1x1xf32>
    %227 = vector.extract %226[0, 0, 0, 0] : f32 from vector<1x1x1x1xf32>
    %228 = tpu.iota {dimensions = array<i32: 1>} : vector<1x128xi32>
    %cst_168 = arith.constant 0.000000e+00 : f32
    %229 = vector.broadcast %cst_168 : f32 to vector<1x128xf32>
    %c0_i32 = arith.constant 0 : i32
    %230 = vector.broadcast %c0_i32 : i32 to vector<1x128xi32>
    %231 = arith.cmpi eq, %228, %230 : vector<1x128xi32>
    %232 = vector.broadcast %157 : f32 to vector<1x128xf32>
    %233 = arith.select %231, %232, %229 : vector<1x128xi1>, vector<1x128xf32>
    %c1_i32_169 = arith.constant 1 : i32
    %234 = vector.broadcast %c1_i32_169 : i32 to vector<1x128xi32>
    %235 = arith.cmpi eq, %228, %234 : vector<1x128xi32>
    %236 = vector.broadcast %172 : f32 to vector<1x128xf32>
    %237 = arith.select %235, %236, %233 : vector<1x128xi1>, vector<1x128xf32>
    %c2_i32 = arith.constant 2 : i32
    %238 = vector.broadcast %c2_i32 : i32 to vector<1x128xi32>
    %239 = arith.cmpi eq, %228, %238 : vector<1x128xi32>
    %240 = vector.broadcast %187 : f32 to vector<1x128xf32>
    %241 = arith.select %239, %240, %237 : vector<1x128xi1>, vector<1x128xf32>
    %c3_i32 = arith.constant 3 : i32
    %242 = vector.broadcast %c3_i32 : i32 to vector<1x128xi32>
    %243 = arith.cmpi eq, %228, %242 : vector<1x128xi32>
    %244 = vector.broadcast %202 : f32 to vector<1x128xf32>
    %245 = arith.select %243, %244, %241 : vector<1x128xi1>, vector<1x128xf32>
    %c4_i32 = arith.constant 4 : i32
    %246 = vector.broadcast %c4_i32 : i32 to vector<1x128xi32>
    %247 = arith.cmpi eq, %228, %246 : vector<1x128xi32>
    %248 = vector.broadcast %212 : f32 to vector<1x128xf32>
    %249 = arith.select %247, %248, %245 : vector<1x128xi1>, vector<1x128xf32>
    %c5_i32 = arith.constant 5 : i32
    %250 = vector.broadcast %c5_i32 : i32 to vector<1x128xi32>
    %251 = arith.cmpi eq, %228, %250 : vector<1x128xi32>
    %252 = vector.broadcast %64 : f32 to vector<1x128xf32>
    %253 = arith.select %251, %252, %249 : vector<1x128xi1>, vector<1x128xf32>
    %c6_i32 = arith.constant 6 : i32
    %254 = vector.broadcast %c6_i32 : i32 to vector<1x128xi32>
    %255 = arith.cmpi eq, %228, %254 : vector<1x128xi32>
    %256 = vector.broadcast %142 : f32 to vector<1x128xf32>
    %257 = arith.select %255, %256, %253 : vector<1x128xi1>, vector<1x128xf32>
    %c7_i32 = arith.constant 7 : i32
    %258 = vector.broadcast %c7_i32 : i32 to vector<1x128xi32>
    %259 = arith.cmpi eq, %228, %258 : vector<1x128xi32>
    %260 = vector.broadcast %227 : f32 to vector<1x128xf32>
    %261 = arith.select %259, %260, %257 : vector<1x128xi1>, vector<1x128xf32>
    %c8_i32 = arith.constant 8 : i32
    %262 = vector.broadcast %c8_i32 : i32 to vector<1x128xi32>
    %263 = arith.cmpi eq, %228, %262 : vector<1x128xi32>
    %264 = vector.broadcast %81 : f32 to vector<1x128xf32>
    %265 = arith.select %263, %264, %261 : vector<1x128xi1>, vector<1x128xf32>
    %c0_170 = arith.constant 0 : index
    %c0_171 = arith.constant 0 : index
    %c0_172 = arith.constant 0 : index
    %266 = vector.load %arg8[%c0_170, %c0_171, %c0_172] : memref<1x1x128xf32, #tpu.memory_space<vmem>>, vector<1x1x128xf32>
    %267 = vector.shape_cast %266 : vector<1x1x128xf32> to vector<1x128xf32>
    %268 = vector.shape_cast %265 : vector<1x128xf32> to vector<1x1x128xf32>
    tpu.vector_store %arg8[%c0_170, %c0_171, %c0_172], %268 {strides = array<i32>} : memref<1x1x128xf32, #tpu.memory_space<vmem>>, vector<1x1x128xf32>,
    return
  }
  func.func @transform_0(%arg0: i32) -> (i32, i32, i32, i32) {
    %c0_i32 = arith.constant 0 : i32
    %c0_i32_0 = arith.constant 0 : i32
    %c0_i32_1 = arith.constant 0 : i32
    %c0_i32_2 = arith.constant 0 : i32
    return %arg0, %c0_i32, %c0_i32_0, %c0_i32_1 : i32, i32, i32, i32
  }
  func.func @transform_1(%arg0: i32) -> (i32, i32, i32, i32) {
    %c0_i32 = arith.constant 0 : i32
    %c0_i32_0 = arith.constant 0 : i32
    %c0_i32_1 = arith.constant 0 : i32
    %c0_i32_2 = arith.constant 0 : i32
    return %arg0, %c0_i32, %c0_i32_0, %c0_i32_1 : i32, i32, i32, i32
  }
  func.func @transform_2(%arg0: i32) -> (i32, i32, i32, i32) {
    %c0_i32 = arith.constant 0 : i32
    %c0_i32_0 = arith.constant 0 : i32
    %c0_i32_1 = arith.constant 0 : i32
    %c0_i32_2 = arith.constant 0 : i32
    return %arg0, %c0_i32, %c0_i32_0, %c0_i32_1 : i32, i32, i32, i32
  }
  func.func @transform_3(%arg0: i32) -> (i32, i32, i32, i32) {
    %c0_i32 = arith.constant 0 : i32
    %c0_i32_0 = arith.constant 0 : i32
    %c0_i32_1 = arith.constant 0 : i32
    %c0_i32_2 = arith.constant 0 : i32
    return %arg0, %c0_i32, %c0_i32_0, %c0_i32_1 : i32, i32, i32, i32
  }
  func.func @transform_4(%arg0: i32) -> (i32, i32, i32, i32) {
    %c0_i32 = arith.constant 0 : i32
    %c0_i32_0 = arith.constant 0 : i32
    %c0_i32_1 = arith.constant 0 : i32
    %c0_i32_2 = arith.constant 0 : i32
    return %arg0, %c0_i32, %c0_i32_0, %c0_i32_1 : i32, i32, i32, i32
  }
  func.func @transform_5(%arg0: i32) -> (i32, i32, i32, i32) {
    %c0_i32 = arith.constant 0 : i32
    %c0_i32_0 = arith.constant 0 : i32
    %c0_i32_1 = arith.constant 0 : i32
    %c0_i32_2 = arith.constant 0 : i32
    return %arg0, %c0_i32, %c0_i32_0, %c0_i32_1 : i32, i32, i32, i32
  }
  func.func @transform_6(%arg0: i32) -> (i32, i32, i32, i32) {
    %c0_i32 = arith.constant 0 : i32
    %c0_i32_0 = arith.constant 0 : i32
    %c0_i32_1 = arith.constant 0 : i32
    %c0_i32_2 = arith.constant 0 : i32
    return %arg0, %c0_i32, %c0_i32_0, %c0_i32_1 : i32, i32, i32, i32
  }
  func.func @transform_7(%arg0: i32) -> (i32, i32, i32) {
    %c0_i32 = arith.constant 0 : i32
    %c0_i32_0 = arith.constant 0 : i32
    %c0_i32_1 = arith.constant 0 : i32
    return %arg0, %c0_i32, %c0_i32_0 : i32, i32, i32
  }
}

</mosaic_0001>

<llo_original>
// kernel: retinex_loss_pallas.1
$region0: #{retinex_loss_pallas.1}
  #allocation0 [shape = 'u32[]', space=smem, size = 0x4, offset = 0x4, fixed_abs, tag = 'smem constant byte address 0x4 - core index']
  #allocation1 [shape = 'u32[144,128]{1,0:T(1,128)}', space=vmem, size = 0x12000, scoped, tag = 'internal scratch']
  #allocation2 [shape = 'f32[24,128]{1,0:T(8,128)}', space=vmem, size = 0x3000, scoped, tag = 'scratch operand']
  #allocation3 [shape = 'f32[24,128]{1,0:T(8,128)}', space=vmem, size = 0x3000, scoped, tag = 'scratch operand']
  %s0 = inlined_call_operand.hbm [shape: f32[2,3,16,16], index: 0, kind: input, shape index: {}]
  %s1 = inlined_call_operand.hbm [shape: f32[2,3,16,16], index: 1, kind: input, shape index: {}]
  %s2 = inlined_call_operand.hbm [shape: f32[2,3,16,16], index: 2, kind: input, shape index: {}]
  %s3 = inlined_call_operand.hbm [shape: f32[2,3,16,16], index: 3, kind: input, shape index: {}]
  %s4 = inlined_call_operand.hbm [shape: f32[2,1,16,16], index: 4, kind: input, shape index: {}]
  %s5 = inlined_call_operand.hbm [shape: f32[2,1,16,16], index: 5, kind: input, shape index: {}]
  %s6 = inlined_call_operand.hbm [shape: f32[2,1,16,16], index: 6, kind: input, shape index: {}]
  %s7 = inlined_call_operand.vmem [shape: f32[2,1,128], index: 7, kind: output, shape index: {}]
  %s8 = sld [smem:[#allocation0]]
  $region89: #{retinex_loss_pallas.1} parent=0
    _
  %s10 = ssub.s32 1, %s8
  %s11 = scalar_select 0, %s10, %s8
  $region1: #{retinex_loss_pallas.1} parent=0
    #allocation4 [shape = 'u8[49152]{0}', space=vmem, size = 0xc000, scoped, tag = 'input window, operand 0']
    #allocation5 [shape = 's32[2]{0}', space=sflag, size = 0x8, scoped, tag = 'scoped memory for retinex_loss_pallas.1']
    #allocation6 [shape = 'u8[49152]{0}', space=vmem, size = 0xc000, scoped, tag = 'input window, operand 1']
    #allocation7 [shape = 's32[2]{0}', space=sflag, size = 0x8, scoped, tag = 'scoped memory for retinex_loss_pallas.1']
    #allocation8 [shape = 'u8[49152]{0}', space=vmem, size = 0xc000, scoped, tag = 'input window, operand 2']
    #allocation9 [shape = 'u8[49152]{0}', space=vmem, size = 0xc000, scoped, tag = 'input window, operand 3']
    #allocation10 [shape = 's32[2]{0}', space=sflag, size = 0x8, scoped, tag = 'scoped memory for retinex_loss_pallas.1']
    #allocation11 [shape = 'u8[16384]{0}', space=vmem, size = 0x4000, scoped, tag = 'input window, operand 4']
    #allocation12 [shape = 'u8[16384]{0}', space=vmem, size = 0x4000, scoped, tag = 'input window, operand 5']
    #allocation13 [shape = 's32[2]{0}', space=sflag, size = 0x8, scoped, tag = 'scoped memory for retinex_loss_pallas.1']
    #allocation14 [shape = 'u8[16384]{0}', space=vmem, size = 0x4000, scoped, tag = 'input window, operand 6']
    %12 = vsyncpa [#allocation5], 0
    %s13 = scalar_lea.sflag [#allocation5], 1
    %14 = vsyncpa %s13, 0
    %15 = vsyncpa [#allocation7], 0
    %s16 = scalar_lea.sflag [#allocation7], 1
    %17 = vsyncpa %s16, 0
    %18 = vsyncpa [#allocation10], 0
    %s19 = scalar_lea.sflag [#allocation10], 1
    %20 = vsyncpa %s19, 0
    %21 = vsyncpa [#allocation13], 0
    %s22 = scalar_lea.sflag [#allocation13], 1
    %23 = vsyncpa %s22, 0
    loop: start=0, step=1, limit=4
    $region2: #{retinex_loss_pallas.1} parent=1 // loop_pre_header
      _
    $region3: #{retinex_loss_pallas.1} parent=1 // loop_header
      %s25 = sphi 0, %s29
      %p26 = scmp.ge.s32.totalorder %s25, 4
      %s35 = sphi 0, %s37
      %s38 = sphi 0, %s35
      %s39 = sphi 0, %s38
      %s55 = sphi 0, %s39
      %s61 = sphi 0, %s63
      %s64 = sphi 0, %s61
      %s65 = sphi 0, %s64
      %s81 = sphi 0, %s65
      %s87 = sphi 0, %s89
      %s90 = sphi 0, %s87
      %s91 = sphi 0, %s90
      %s107 = sphi 0, %s91
      %s113 = sphi 0, %s115
      %s116 = sphi 0, %s113
      %s117 = sphi 0, %s116
      %s133 = sphi 0, %s117
      %s139 = sphi 0, %s141
      %s142 = sphi 0, %s139
      %s143 = sphi 0, %s142
      %s159 = sphi 0, %s143
      %s165 = sphi 0, %s167
      %s168 = sphi 0, %s165
      %s169 = sphi 0, %s168
      %s185 = sphi 0, %s169
      %s191 = sphi 0, %s193
      %s194 = sphi 0, %s191
      %s195 = sphi 0, %s194
      %s211 = sphi 0, %s195
      %s217 = sphi 0, %s219
      %s220 = sphi 0, %s217
      %s221 = sphi 0, %s220
      %s237 = sphi 0, %s221
    $region4: #{retinex_loss_pallas.1} parent=1 // loop_header_branch
      %28 = sbr.rel (%p26) target = $region8
    $region5: #{retinex_loss_pallas.1} parent=1 // loop_body
      %s30 = ssub.s32 %s25, 1
      %s31 = ssub.s32 %s25, 2
      %s32 = sadd.s32 %s25, 1
      %s33 = ssub.s32 %s25, %s32
      %p34 = scmp.eq.s32.totalorder %s33, 0
      %s36 = sadd.s32 %s35, 1
      %s37 = scalar_select %p34, %s35, %s36
      %p40 = pneg %p34
      %p41 = scmp.eq.s32.totalorder %s25, 1
      %p42 = por %p40, %p41
      %p43 = scmp.ne.s32.totalorder %s35, %s38
      %p44 = scmp.eq.s32.totalorder %s25, 0
      %p45 = por %p43, %p44
      %p46 = scmp.ne.s32.totalorder %s35, %s38
      %p47 = scmp.eq.s32.totalorder %s30, 1
      %p48 = por %p46, %p47
      %p49 = scmp.ne.s32.totalorder %s38, %s39
      %p50 = scmp.eq.s32.totalorder %s30, 0
      %p51 = por %p49, %p50
      %p52 = scmp.ne.s32.totalorder %s38, %s39
      %p53 = scmp.eq.s32.totalorder %s31, 1
      %p54 = por %p52, %p53
      %p56 = scmp.ne.s32.totalorder %s39, %s55
      %p57 = scmp.eq.s32.totalorder %s31, 0
      %p58 = por %p56, %p57
      %s59 = ssub.s32 %s25, %s32
      %p60 = scmp.eq.s32.totalorder %s59, 0
      %s62 = sadd.s32 %s61, 1
      %s63 = scalar_select %p60, %s61, %s62
      %p66 = pneg %p60
      %p67 = scmp.eq.s32.totalorder %s25, 1
      %p68 = por %p66, %p67
      %p69 = scmp.ne.s32.totalorder %s61, %s64
      %p70 = scmp.eq.s32.totalorder %s25, 0
      %p71 = por %p69, %p70
      %p72 = scmp.ne.s32.totalorder %s61, %s64
      %p73 = scmp.eq.s32.totalorder %s30, 1
      %p74 = por %p72, %p73
      %p75 = scmp.ne.s32.totalorder %s64, %s65
      %p76 = scmp.eq.s32.totalorder %s30, 0
      %p77 = por %p75, %p76
      %p78 = scmp.ne.s32.totalorder %s64, %s65
      %p79 = scmp.eq.s32.totalorder %s31, 1
      %p80 = por %p78, %p79
      %p82 = scmp.ne.s32.totalorder %s65, %s81
      %p83 = scmp.eq.s32.totalorder %s31, 0
      %p84 = por %p82, %p83
      %s85 = ssub.s32 %s25, %s32
      %p86 = scmp.eq.s32.totalorder %s85, 0
      %s88 = sadd.s32 %s87, 1
      %s89 = scalar_select %p86, %s87, %s88
      %p92 = pneg %p86
      %p93 = scmp.eq.s32.totalorder %s25, 1
      %p94 = por %p92, %p93
      %p95 = scmp.ne.s32.totalorder %s87, %s90
      %p96 = scmp.eq.s32.totalorder %s25, 0
      %p97 = por %p95, %p96
      %p98 = scmp.ne.s32.totalorder %s87, %s90
      %p99 = scmp.eq.s32.totalorder %s30, 1
      %p100 = por %p98, %p99
      %p101 = scmp.ne.s32.totalorder %s90, %s91
      %p102 = scmp.eq.s32.totalorder %s30, 0
      %p103 = por %p101, %p102
      %p104 = scmp.ne.s32.totalorder %s90, %s91
      %p105 = scmp.eq.s32.totalorder %s31, 1
      %p106 = por %p104, %p105
      %p108 = scmp.ne.s32.totalorder %s91, %s107
      %p109 = scmp.eq.s32.totalorder %s31, 0
      %p110 = por %p108, %p109
      %s111 = ssub.s32 %s25, %s32
      %p112 = scmp.eq.s32.totalorder %s111, 0
      %s114 = sadd.s32 %s113, 1
      %s115 = scalar_select %p112, %s113, %s114
      %p118 = pneg %p112
      %p119 = scmp.eq.s32.totalorder %s25, 1
      %p120 = por %p118, %p119
      %p121 = scmp.ne.s32.totalorder %s113, %s116
      %p122 = scmp.eq.s32.totalorder %s25, 0
      %p123 = por %p121, %p122
      %p124 = scmp.ne.s32.totalorder %s113, %s116
      %p125 = scmp.eq.s32.totalorder %s30, 1
      %p126 = por %p124, %p125
      %p127 = scmp.ne.s32.totalorder %s116, %s117
      %p128 = scmp.eq.s32.totalorder %s30, 0
      %p129 = por %p127, %p128
      %p130 = scmp.ne.s32.totalorder %s116, %s117
      %p131 = scmp.eq.s32.totalorder %s31, 1
      %p132 = por %p130, %p131
      %p134 = scmp.ne.s32.totalorder %s117, %s133
      %p135 = scmp.eq.s32.totalorder %s31, 0
      %p136 = por %p134, %p135
      %s137 = ssub.s32 %s25, %s32
      %p138 = scmp.eq.s32.totalorder %s137, 0
      %s140 = sadd.s32 %s139, 1
      %s141 = scalar_select %p138, %s139, %s140
      %p144 = pneg %p138
      %p145 = scmp.eq.s32.totalorder %s25, 1
      %p146 = por %p144, %p145
      %p147 = scmp.ne.s32.totalorder %s139, %s142
      %p148 = scmp.eq.s32.totalorder %s25, 0
      %p149 = por %p147, %p148
      %p150 = scmp.ne.s32.totalorder %s139, %s142
      %p151 = scmp.eq.s32.totalorder %s30, 1
      %p152 = por %p150, %p151
      %p153 = scmp.ne.s32.totalorder %s142, %s143
      %p154 = scmp.eq.s32.totalorder %s30, 0
      %p155 = por %p153, %p154
      %p156 = scmp.ne.s32.totalorder %s142, %s143
      %p157 = scmp.eq.s32.totalorder %s31, 1
      %p158 = por %p156, %p157
      %p160 = scmp.ne.s32.totalorder %s143, %s159
      %p161 = scmp.eq.s32.totalorder %s31, 0
      %p162 = por %p160, %p161
      %s163 = ssub.s32 %s25, %s32
      %p164 = scmp.eq.s32.totalorder %s163, 0
      %s166 = sadd.s32 %s165, 1
      %s167 = scalar_select %p164, %s165, %s166
      %p170 = pneg %p164
      %p171 = scmp.eq.s32.totalorder %s25, 1
      %p172 = por %p170, %p171
      %p173 = scmp.ne.s32.totalorder %s165, %s168
      %p174 = scmp.eq.s32.totalorder %s25, 0
      %p175 = por %p173, %p174
      %p176 = scmp.ne.s32.totalorder %s165, %s168
      %p177 = scmp.eq.s32.totalorder %s30, 1
      %p178 = por %p176, %p177
      %p179 = scmp.ne.s32.totalorder %s168, %s169
      %p180 = scmp.eq.s32.totalorder %s30, 0
      %p181 = por %p179, %p180
      %p182 = scmp.ne.s32.totalorder %s168, %s169
      %p183 = scmp.eq.s32.totalorder %s31, 1
      %p184 = por %p182, %p183
      %p186 = scmp.ne.s32.totalorder %s169, %s185
      %p187 = scmp.eq.s32.totalorder %s31, 0
      %p188 = por %p186, %p187
      %s189 = ssub.s32 %s25, %s32
      %p190 = scmp.eq.s32.totalorder %s189, 0
      %s192 = sadd.s32 %s191, 1
      %s193 = scalar_select %p190, %s191, %s192
      %p196 = pneg %p190
      %p197 = scmp.eq.s32.totalorder %s25, 1
      %p198 = por %p196, %p197
      %p199 = scmp.ne.s32.totalorder %s191, %s194
      %p200 = scmp.eq.s32.totalorder %s25, 0
      %p201 = por %p199, %p200
      %p202 = scmp.ne.s32.totalorder %s191, %s194
      %p203 = scmp.eq.s32.totalorder %s30, 1
      %p204 = por %p202, %p203
      %p205 = scmp.ne.s32.totalorder %s194, %s195
      %p206 = scmp.eq.s32.totalorder %s30, 0
      %p207 = por %p205, %p206
      %p208 = scmp.ne.s32.totalorder %s194, %s195
      %p209 = scmp.eq.s32.totalorder %s31, 1
      %p210 = por %p208, %p209
      %p212 = scmp.ne.s32.totalorder %s195, %s211
      %p213 = scmp.eq.s32.totalorder %s31, 0
      %p214 = por %p212, %p213
      %s215 = ssub.s32 %s25, %s32
      %p216 = scmp.eq.s32.totalorder %s215, 0
      %s218 = sadd.s32 %s217, 1
      %s219 = scalar_select %p216, %s217, %s218
      %p222 = pneg %p216
      %p223 = scmp.eq.s32.totalorder %s25, 1
      %p224 = por %p222, %p223
      %p225 = scmp.ne.s32.totalorder %s217, %s220
      %p226 = scmp.eq.s32.totalorder %s25, 0
      %p227 = por %p225, %p226
      %p228 = scmp.ne.s32.totalorder %s217, %s220
      %p229 = scmp.eq.s32.totalorder %s30, 1
      %p230 = por %p228, %p229
      %p231 = scmp.ne.s32.totalorder %s220, %s221
      %p232 = scmp.eq.s32.totalorder %s30, 0
      %p233 = por %p231, %p232
      %p234 = scmp.ne.s32.totalorder %s220, %s221
      %p235 = scmp.eq.s32.totalorder %s31, 1
      %p236 = por %p234, %p235
      %p238 = scmp.ne.s32.totalorder %s221, %s237
      %p239 = scmp.eq.s32.totalorder %s31, 0
      %p240 = por %p238, %p239
      %p241 = scmp.le.s32.totalorder 1, %s25
      %p242 = scmp.lt.s32.totalorder %s25, 3
      %p243 = pnand %p241, %p242
      %p244 = pneg %p243
      // Predicated region
      $region9: #{retinex_loss_pallas.1} parent=5 // pred_check
        _
      $region10: #{retinex_loss_pallas.1} parent=5 // pred_check_branch
        %246 = sbr.rel (%p243) target = $region12
      $region11: #{retinex_loss_pallas.1} parent=5 // pred_region
        %s247 = ssub.s32 %s25, 1
      $region12: #{retinex_loss_pallas.1} parent=5 // pred_fallthru
        _
      %p248 = scmp.lt.s32.totalorder %s25, 2
      // Predicated region
      $region13: #{retinex_loss_pallas.1} parent=5 // pred_check
        %p249 = pneg %p248
      $region14: #{retinex_loss_pallas.1} parent=5 // pred_check_branch
        %251 = sbr.rel (%p249) target = $region16
      $region15: #{retinex_loss_pallas.1} parent=5 // pred_region
        // Predicated region
        $region17: #{retinex_loss_pallas.1} parent=15 // pred_check
          %p252 = pneg %p45
        $region18: #{retinex_loss_pallas.1} parent=15 // pred_check_branch
          %254 = sbr.rel (%p252) target = $region20
        $region19: #{retinex_loss_pallas.1} parent=15 // pred_region
          %s255 = sand.u32 %s35, 1
          %s256 = scalar_lea.sflag [#allocation5], %s255
          %s257 = sand.u32 %s35, 1
          %s258 = smul.addr %s257, 48
          %s259 = scalar_lea.vmem [#allocation4], %s258
          %s261 = ssub.s32 768, 768
          %262 = vsyncadd %s256, %s261
          %s263 = smul.addr %s25, 6
          %s264 = smul.addr %s263, 128
          %s265 = scalar_lea.hbm %s0, %s264
          %s266 = sshll.u32 %s259, 4
          %s267 = int_to_ptr.vmem [resolvable:$true] %s266
          %272 = dma.hbm_to_vmem [thread:$0]  %s265, 768, %s267, %s256, 128, 128, 8
        $region20: #{retinex_loss_pallas.1} parent=15 // pred_fallthru
          _
        // Predicated region
        $region21: #{retinex_loss_pallas.1} parent=15 // pred_check
          %p273 = pneg %p71
        $region22: #{retinex_loss_pallas.1} parent=15 // pred_check_branch
          %275 = sbr.rel (%p273) target = $region24
        $region23: #{retinex_loss_pallas.1} parent=15 // pred_region
          %s276 = sand.u32 %s25, 1
          %s277 = scalar_lea.sflag [#allocation7], %s276
          %s278 = sand.u32 %s61, 1
          %s279 = smul.addr %s278, 48
          %s280 = scalar_lea.vmem [#allocation6], %s279
          %s282 = ssub.s32 768, 768
          %283 = vsyncadd %s277, %s282
          %s284 = smul.addr %s25, 6
          %s285 = smul.addr %s284, 128
          %s286 = scalar_lea.hbm %s1, %s285
          %s287 = sshll.u32 %s280, 4
          %s288 = int_to_ptr.vmem [resolvable:$true] %s287
          %293 = dma.hbm_to_vmem [thread:$0]  %s286, 768, %s288, %s277, 128, 128, 8
        $region24: #{retinex_loss_pallas.1} parent=15 // pred_fallthru
          _
        // Predicated region
        $region25: #{retinex_loss_pallas.1} parent=15 // pred_check
          %p294 = pneg %p97
        $region26: #{retinex_loss_pallas.1} parent=15 // pred_check_branch
          %296 = sbr.rel (%p294) target = $region28
        $region27: #{retinex_loss_pallas.1} parent=15 // pred_region
          %s297 = sand.u32 %s25, 1
          %s298 = scalar_lea.sflag [#allocation7], %s297
          %s299 = sand.u32 %s87, 1
          %s300 = smul.addr %s299, 48
          %s301 = scalar_lea.vmem [#allocation8], %s300
          %s303 = ssub.s32 768, 768
          %304 = vsyncadd %s298, %s303
          %s305 = smul.addr %s25, 6
          %s306 = smul.addr %s305, 128
          %s307 = scalar_lea.hbm %s2, %s306
          %s308 = sshll.u32 %s301, 4
          %s309 = int_to_ptr.vmem [resolvable:$true] %s308
          %314 = dma.hbm_to_vmem [thread:$0]  %s307, 768, %s309, %s298, 128, 128, 8
        $region28: #{retinex_loss_pallas.1} parent=15 // pred_fallthru
          _
        // Predicated region
        $region29: #{retinex_loss_pallas.1} parent=15 // pred_check
          %p315 = pneg %p123
        $region30: #{retinex_loss_pallas.1} parent=15 // pred_check_branch
          %317 = sbr.rel (%p315) target = $region32
        $region31: #{retinex_loss_pallas.1} parent=15 // pred_region
          %s318 = sand.u32 %s25, 1
          %s319 = scalar_lea.sflag [#allocation10], %s318
          %s320 = sand.u32 %s113, 1
          %s321 = smul.addr %s320, 48
          %s322 = scalar_lea.vmem [#allocation9], %s321
          %s324 = ssub.s32 768, 768
          %325 = vsyncadd %s319, %s324
          %s326 = smul.addr %s25, 6
          %s327 = smul.addr %s326, 128
          %s328 = scalar_lea.hbm %s3, %s327
          %s329 = sshll.u32 %s322, 4
          %s330 = int_to_ptr.vmem [resolvable:$true] %s329
          %335 = dma.hbm_to_vmem [thread:$0]  %s328, 768, %s330, %s319, 128, 128, 8
        $region32: #{retinex_loss_pallas.1} parent=15 // pred_fallthru
          _
        // Predicated region
        $region33: #{retinex_loss_pallas.1} parent=15 // pred_check
          %p336 = pneg %p149
        $region34: #{retinex_loss_pallas.1} parent=15 // pred_check_branch
          %338 = sbr.rel (%p336) target = $region36
        $region35: #{retinex_loss_pallas.1} parent=15 // pred_region
          %s339 = sand.u32 %s25, 1
          %s340 = scalar_lea.sflag [#allocation10], %s339
          %s341 = sand.u32 %s139, 1
          %s342 = smul.addr %s341, 16
          %s343 = scalar_lea.vmem [#allocation11], %s342
          %s345 = ssub.s32 256, 256
          %346 = vsyncadd %s340, %s345
          %s347 = smul.addr %s25, 2
          %s348 = smul.addr %s347, 128
          %s349 = scalar_lea.hbm %s4, %s348
          %s350 = sshll.u32 %s343, 4
          %s351 = int_to_ptr.vmem [resolvable:$true] %s350
          %356 = dma.hbm_to_vmem [thread:$0]  %s349, 256, %s351, %s340, 128, 128, 8
        $region36: #{retinex_loss_pallas.1} parent=15 // pred_fallthru
          _
        // Predicated region
        $region37: #{retinex_loss_pallas.1} parent=15 // pred_check
          %p357 = pneg %p175
        $region38: #{retinex_loss_pallas.1} parent=15 // pred_check_branch
          %359 = sbr.rel (%p357) target = $region40
        $region39: #{retinex_loss_pallas.1} parent=15 // pred_region
          %s360 = sand.u32 %s25, 1
          %s361 = scalar_lea.sflag [#allocation13], %s360
          %s362 = sand.u32 %s165, 1
          %s363 = smul.addr %s362, 16
          %s364 = scalar_lea.vmem [#allocation12], %s363
          %s366 = ssub.s32 256, 256
          %367 = vsyncadd %s361, %s366
          %s368 = smul.addr %s25, 2
          %s369 = smul.addr %s368, 128
          %s370 = scalar_lea.hbm %s5, %s369
          %s371 = sshll.u32 %s364, 4
          %s372 = int_to_ptr.vmem [resolvable:$true] %s371
          %377 = dma.hbm_to_vmem [thread:$0]  %s370, 256, %s372, %s361, 128, 128, 8
        $region40: #{retinex_loss_pallas.1} parent=15 // pred_fallthru
          _
        // Predicated region
        $region41: #{retinex_loss_pallas.1} parent=15 // pred_check
          %p378 = pneg %p201
        $region42: #{retinex_loss_pallas.1} parent=15 // pred_check_branch
          %380 = sbr.rel (%p378) target = $region44
        $region43: #{retinex_loss_pallas.1} parent=15 // pred_region
          %s381 = sand.u32 %s25, 1
          %s382 = scalar_lea.sflag [#allocation13], %s381
          %s383 = sand.u32 %s191, 1
          %s384 = smul.addr %s383, 16
          %s385 = scalar_lea.vmem [#allocation14], %s384
          %s387 = ssub.s32 256, 256
          %388 = vsyncadd %s382, %s387
          %s389 = smul.addr %s25, 2
          %s390 = smul.addr %s389, 128
          %s391 = scalar_lea.hbm %s6, %s390
          %s392 = sshll.u32 %s385, 4
          %s393 = int_to_ptr.vmem [resolvable:$true] %s392
          %398 = dma.hbm_to_vmem [thread:$0]  %s391, 256, %s393, %s382, 128, 128, 8
        $region44: #{retinex_loss_pallas.1} parent=15 // pred_fallthru
          _
      $region16: #{retinex_loss_pallas.1} parent=5 // pred_fallthru
        _
      %p399 = scmp.le.s32.totalorder 1, %s25
      %p400 = scmp.lt.s32.totalorder %s25, 3
      %p401 = pnand %p399, %p400
      %p402 = pneg %p401
      // Predicated region
      $region45: #{retinex_loss_pallas.1} parent=5 // pred_check
        _
      $region46: #{retinex_loss_pallas.1} parent=5 // pred_check_branch
        %404 = sbr.rel (%p401) target = $region48
      $region47: #{retinex_loss_pallas.1} parent=5 // pred_region
        %s405 = ssub.s32 %s25, 1
        %s406 = sand.u32 %s38, 1
        %s407 = scalar_lea.sflag [#allocation5], %s406
        %s408 = sand.u32 %s38, 1
        %s409 = smul.addr %s408, 48
        %s410 = scalar_lea.vmem [#allocation4], %s409
        // Predicated region
        $region49: #{retinex_loss_pallas.1} parent=47 // pred_check
          %p411 = pneg %p51
        $region50: #{retinex_loss_pallas.1} parent=47 // pred_check_branch
          %413 = sbr.rel (%p411) target = $region52
        $region51: #{retinex_loss_pallas.1} parent=47 // pred_region
          %414 = dma.done %s407, 768
        $region52: #{retinex_loss_pallas.1} parent=47 // pred_fallthru
          _
        %s415 = sand.u32 %s30, 1
        %s416 = scalar_lea.sflag [#allocation7], %s415
        %s417 = sand.u32 %s64, 1
        %s418 = smul.addr %s417, 48
        %s419 = scalar_lea.vmem [#allocation6], %s418
        // Predicated region
        $region53: #{retinex_loss_pallas.1} parent=47 // pred_check
          %p420 = pneg %p77
        $region54: #{retinex_loss_pallas.1} parent=47 // pred_check_branch
          %422 = sbr.rel (%p420) target = $region56
        $region55: #{retinex_loss_pallas.1} parent=47 // pred_region
          %423 = dma.done %s416, 768
        $region56: #{retinex_loss_pallas.1} parent=47 // pred_fallthru
          _
        %s424 = sand.u32 %s30, 1
        %s425 = scalar_lea.sflag [#allocation7], %s424
        %s426 = sand.u32 %s90, 1
        %s427 = smul.addr %s426, 48
        %s428 = scalar_lea.vmem [#allocation8], %s427
        // Predicated region
        $region57: #{retinex_loss_pallas.1} parent=47 // pred_check
          %p429 = pneg %p103
        $region58: #{retinex_loss_pallas.1} parent=47 // pred_check_branch
          %431 = sbr.rel (%p429) target = $region60
        $region59: #{retinex_loss_pallas.1} parent=47 // pred_region
          %432 = dma.done %s425, 768
        $region60: #{retinex_loss_pallas.1} parent=47 // pred_fallthru
          _
        %s433 = sand.u32 %s30, 1
        %s434 = scalar_lea.sflag [#allocation10], %s433
        %s435 = sand.u32 %s116, 1
        %s436 = smul.addr %s435, 48
        %s437 = scalar_lea.vmem [#allocation9], %s436
        // Predicated region
        $region61: #{retinex_loss_pallas.1} parent=47 // pred_check
          %p438 = pneg %p129
        $region62: #{retinex_loss_pallas.1} parent=47 // pred_check_branch
          %440 = sbr.rel (%p438) target = $region64
        $region63: #{retinex_loss_pallas.1} parent=47 // pred_region
          %441 = dma.done %s434, 768
        $region64: #{retinex_loss_pallas.1} parent=47 // pred_fallthru
          _
        %s442 = sand.u32 %s30, 1
        %s443 = scalar_lea.sflag [#allocation10], %s442
        %s444 = sand.u32 %s142, 1
        %s445 = smul.addr %s444, 16
        %s446 = scalar_lea.vmem [#allocation11], %s445
        // Predicated region
        $region65: #{retinex_loss_pallas.1} parent=47 // pred_check
          %p447 = pneg %p155
        $region66: #{retinex_loss_pallas.1} parent=47 // pred_check_branch
          %449 = sbr.rel (%p447) target = $region68
        $region67: #{retinex_loss_pallas.1} parent=47 // pred_region
          %450 = dma.done %s443, 256
        $region68: #{retinex_loss_pallas.1} parent=47 // pred_fallthru
          _
        %s451 = sand.u32 %s30, 1
        %s452 = scalar_lea.sflag [#allocation13], %s451
        %s453 = sand.u32 %s168, 1
        %s454 = smul.addr %s453, 16
        %s455 = scalar_lea.vmem [#allocation12], %s454
        // Predicated region
        $region69: #{retinex_loss_pallas.1} parent=47 // pred_check
          %p456 = pneg %p181
        $region70: #{retinex_loss_pallas.1} parent=47 // pred_check_branch
          %458 = sbr.rel (%p456) target = $region72
        $region71: #{retinex_loss_pallas.1} parent=47 // pred_region
          %459 = dma.done %s452, 256
        $region72: #{retinex_loss_pallas.1} parent=47 // pred_fallthru
          _
        %s460 = sand.u32 %s30, 1
        %s461 = scalar_lea.sflag [#allocation13], %s460
        %s462 = sand.u32 %s194, 1
        %s463 = smul.addr %s462, 16
        %s464 = scalar_lea.vmem [#allocation14], %s463
        // Predicated region
        $region73: #{retinex_loss_pallas.1} parent=47 // pred_check
          %p465 = pneg %p207
        $region74: #{retinex_loss_pallas.1} parent=47 // pred_check_branch
          %467 = sbr.rel (%p465) target = $region76
        $region75: #{retinex_loss_pallas.1} parent=47 // pred_region
          %468 = dma.done %s461, 256
        $region76: #{retinex_loss_pallas.1} parent=47 // pred_fallthru
          _
        %s469 = sand.u32 %s38, 1
        %s470 = scalar_lea.sflag [#allocation5], %s469
        %s471 = sand.u32 %s38, 1
        %s472 = smul.addr %s471, 48
        %s473 = scalar_lea.vmem [#allocation4], %s472
        %p474 = pneg %p51
        %p475 = pneg %p48
        %s476 = sand.u32 %s30, 1
        %s477 = scalar_lea.sflag [#allocation7], %s476
        %s478 = sand.u32 %s64, 1
        %s479 = smul.addr %s478, 48
        %s480 = scalar_lea.vmem [#allocation6], %s479
        %p481 = pneg %p77
        %p482 = pneg %p74
        %s483 = sand.u32 %s30, 1
        %s484 = scalar_lea.sflag [#allocation7], %s483
        %s485 = sand.u32 %s90, 1
        %s486 = smul.addr %s485, 48
        %s487 = scalar_lea.vmem [#allocation8], %s486
        %p488 = pneg %p103
        %p489 = pneg %p100
        %s490 = sand.u32 %s30, 1
        %s491 = scalar_lea.sflag [#allocation10], %s490
        %s492 = sand.u32 %s116, 1
        %s493 = smul.addr %s492, 48
        %s494 = scalar_lea.vmem [#allocation9], %s493
        %p495 = pneg %p129
        %p496 = pneg %p126
        %s497 = sand.u32 %s30, 1
        %s498 = scalar_lea.sflag [#allocation10], %s497
        %s499 = sand.u32 %s142, 1
        %s500 = smul.addr %s499, 16
        %s501 = scalar_lea.vmem [#allocation11], %s500
        %p502 = pneg %p155
        %p503 = pneg %p152
        %s504 = sand.u32 %s30, 1
        %s505 = scalar_lea.sflag [#allocation13], %s504
        %s506 = sand.u32 %s168, 1
        %s507 = smul.addr %s506, 16
        %s508 = scalar_lea.vmem [#allocation12], %s507
        %p509 = pneg %p181
        %p510 = pneg %p178
        %s511 = sand.u32 %s30, 1
        %s512 = scalar_lea.sflag [#allocation13], %s511
        %s513 = sand.u32 %s194, 1
        %s514 = smul.addr %s513, 16
        %s515 = scalar_lea.vmem [#allocation14], %s514
        %p516 = pneg %p207
        %p517 = pneg %p204
        %p518 = pneg %p233
        %p519 = pneg %p230
        %p520 = scmp.lt.s32.totalorder %s30, 1
        %s521 = scalar_select %p520, %s30, 1
        %s522 = scalar_lea.vmem %s7, %s521
        %p523 = scmp.lt.s32.totalorder %s30, 1
        %s524 = scalar_select %p523, %s30, 1
        %s525 = scalar_lea.vmem %s7, %s524
        %526 = vst [vmem:[#allocation2] sm:$0xff] 0.0
        %527 = vst [vmem:[#allocation2 + $0x8] sm:$0xff] 0.0
        %528 = vst [vmem:[#allocation2 + $0x10] sm:$0xff] 0.0
        %529 = vst [vmem:[#allocation3] sm:$0xff] 0.0
        %530 = vst [vmem:[#allocation3 + $0x8] sm:$0xff] 0.0
        %531 = vst [vmem:[#allocation3 + $0x10] sm:$0xff] 0.0
        %v532 = vld [vmem:[%s428] sm:$0xff]
        %v533 = vld [vmem:[%s428 + $0x8] sm:$0xff]
        %v534 = vmul.f32 %v532, 0.299
        %v535 = vmul.f32 %v533, 0.299
        %s536 = scalar_lea.vmem %s428, 16 [#allocation8]
        %v537 = vld [vmem:[%s536] sm:$0xff]
        %v538 = vld [vmem:[%s536 + $0x8] sm:$0xff]
        %v539 = vmul.f32 %v537, 0.587
        %v540 = vmul.f32 %v538, 0.587
        %v541 = vadd.f32 %v534, %v539
        %v542 = vadd.f32 %v535, %v540
        %s543 = scalar_lea.vmem %s428, 32 [#allocation8]
        %v544 = vld [vmem:[%s543] sm:$0xff]
        %v545 = vld [vmem:[%s543 + $0x8] sm:$0xff]
        %v546 = vmul.f32 %v544, 0.114
        %v547 = vmul.f32 %v545, 0.114
        %v548 = vadd.f32 %v541, %v546
        %v549 = vadd.f32 %v542, %v547
        %vm550 = vcmask 130048
        %551 = vst.msk [vmem:[#allocation2] sm:$0xff] %vm550, %v548
        %552 = vst.msk [vmem:[#allocation2 + $0x8] sm:$0xff] %vm550, %v549
        %v553 = vld [vmem:[#allocation2] sm:$0xff]
        %v554 = vld [vmem:[#allocation2 + $0x8] sm:$0xff]
        %v555 = vld [vmem:[#allocation2 + $0x10] sm:$0xff]
        %556 = vrot.lane.b32.xlu0 %v553, 1
        %v557 = vpop.permute.xlu0 %556
        %558 = vrot.lane.b32.xlu0 %v554, 1
        %v559 = vpop.permute.xlu0 %558
        %560 = vrot.lane.b32.xlu0 %v555, 1
        %v561 = vpop.permute.xlu0 %560
        %v562 = vsub.f32 %v553, %v557
        %v563 = vsub.f32 %v554, %v559
        %v564 = vsub.f32 %v555, %v561
        %v565 = vand.u32 2147483647, %v562
        %v566 = vand.u32 2147483647, %v563
        %v567 = vand.u32 2147483647, %v564
        %568 = vrot.lane.b32.xlu0 %v565, 1
        %v569 = vpop.permute.xlu0 %568
        %570 = vrot.lane.b32.xlu0 %v566, 1
        %v571 = vpop.permute.xlu0 %570
        %572 = vrot.lane.b32.xlu0 %v567, 1
        %v573 = vpop.permute.xlu0 %572
        %v574 = vadd.f32 %v565, %v569
        %v575 = vadd.f32 %v566, %v571
        %v576 = vadd.f32 %v567, %v573
        %577 = vrot.lane.b32.xlu0 %v565, 127
        %v578 = vpop.permute.xlu0 %577
        %579 = vrot.lane.b32.xlu0 %v566, 127
        %v580 = vpop.permute.xlu0 %579
        %581 = vrot.lane.b32.xlu0 %v567, 127
        %v582 = vpop.permute.xlu0 %581
        %v583 = vadd.f32 %v574, %v578
        %v584 = vadd.f32 %v575, %v580
        %v585 = vadd.f32 %v576, %v582
        %v586 = vrot.slane %v583, 7
        %v587 = vrot.slane %v584, 7
        %v588 = vrot.slane %v585, 7
        %v589 = vlaneseq
        %v590 = vshrl.u32 %v589, 7
        %vm591 = vcmp.lt.s32.totalorder %v590, 1
        %v592 = vsel %vm591, %v587, %v588
        %v593 = vsel %vm591, %v586, %v587
        %v594 = vsel %vm591, %v588, %v586
        %v595 = vadd.f32 %v583, %v594
        %v596 = vadd.f32 %v584, %v593
        %v597 = vadd.f32 %v585, %v592
        %v598 = vrot.slane %v583, 1
        %v599 = vrot.slane %v584, 1
        %v600 = vrot.slane %v585, 1
        %vm601 = vcmp.lt.s32.totalorder %v590, 7
        %v602 = vsel %vm601, %v599, %v600
        %v603 = vsel %vm601, %v598, %v599
        %v604 = vsel %vm601, %v600, %v598
        %v605 = vadd.f32 %v595, %v603
        %v606 = vadd.f32 %v596, %v602
        %v607 = vadd.f32 %v597, %v604
        %v608 = vmul.f32 %v605, -1.1111112
        %v609 = vmul.f32 %v606, -1.1111112
        %v610 = vmul.f32 %v607, -1.1111112
        %v611 = vmul.f32 %v608, 1.442695
        %v612 = vpow.pop %v611
        %v613 = vmul.f32 %v609, 1.442695
        %v614 = vpow.pop %v613
        %v615 = vmul.f32 %v610, 1.442695
        %v616 = vpow.pop %v615
        %v617 = vrot.slane %v553, 7
        %v618 = vrot.slane %v554, 7
        %v619 = vrot.slane %v555, 7
        %v620 = vsel %vm591, %v618, %v619
        %v621 = vsel %vm591, %v617, %v618
        %v622 = vsel %vm591, %v619, %v617
        %v623 = vsub.f32 %v553, %v622
        %v624 = vsub.f32 %v554, %v621
        %v625 = vsub.f32 %v555, %v620
        %v626 = vand.u32 2147483647, %v623
        %v627 = vand.u32 2147483647, %v624
        %v628 = vand.u32 2147483647, %v625
        %629 = vrot.lane.b32.xlu0 %v626, 1
        %v630 = vpop.permute.xlu0 %629
        %631 = vrot.lane.b32.xlu0 %v627, 1
        %v632 = vpop.permute.xlu0 %631
        %633 = vrot.lane.b32.xlu0 %v628, 1
        %v634 = vpop.permute.xlu0 %633
        %v635 = vadd.f32 %v626, %v630
        %v636 = vadd.f32 %v627, %v632
        %v637 = vadd.f32 %v628, %v634
        %638 = vrot.lane.b32.xlu0 %v626, 127
        %v639 = vpop.permute.xlu0 %638
        %640 = vrot.lane.b32.xlu0 %v627, 127
        %v641 = vpop.permute.xlu0 %640
        %642 = vrot.lane.b32.xlu0 %v628, 127
        %v643 = vpop.permute.xlu0 %642
        %v644 = vadd.f32 %v635, %v639
        %v645 = vadd.f32 %v636, %v641
        %v646 = vadd.f32 %v637, %v643
        %v647 = vrot.slane %v644, 7
        %v648 = vrot.slane %v645, 7
        %v649 = vrot.slane %v646, 7
        %v650 = vsel %vm591, %v648, %v649
        %v651 = vsel %vm591, %v647, %v648
        %v652 = vsel %vm591, %v649, %v647
        %v653 = vadd.f32 %v644, %v652
        %v654 = vadd.f32 %v645, %v651
        %v655 = vadd.f32 %v646, %v650
        %v656 = vrot.slane %v644, 1
        %v657 = vrot.slane %v645, 1
        %v658 = vrot.slane %v646, 1
        %v659 = vsel %vm601, %v657, %v658
        %v660 = vsel %vm601, %v656, %v657
        %v661 = vsel %vm601, %v658, %v656
        %v662 = vadd.f32 %v653, %v660
        %v663 = vadd.f32 %v654, %v659
        %v664 = vadd.f32 %v655, %v661
        %v665 = vmul.f32 %v662, -1.1111112
        %v666 = vmul.f32 %v663, -1.1111112
        %v667 = vmul.f32 %v664, -1.1111112
        %v668 = vmul.f32 %v665, 1.442695
        %v669 = vpow.pop %v668
        %v670 = vmul.f32 %v666, 1.442695
        %v671 = vpow.pop %v670
        %v672 = vmul.f32 %v667, 1.442695
        %v673 = vpow.pop %v672
        %v674 = vld [vmem:[%s446] sm:$0xff]
        %v675 = vld [vmem:[%s446 + $0x8] sm:$0xff]
        %676 = vst.msk [vmem:[#allocation3] sm:$0xff] %vm550, %v674
        %677 = vst.msk [vmem:[#allocation3 + $0x8] sm:$0xff] %vm550, %v675
        %v678 = vld [vmem:[#allocation3] sm:$0xff]
        %v679 = vld [vmem:[#allocation3 + $0x8] sm:$0xff]
        %v680 = vld [vmem:[#allocation3 + $0x10] sm:$0xff]
        %681 = vrot.lane.b32.xlu0 %v678, 1
        %v682 = vpop.permute.xlu0 %681
        %683 = vrot.lane.b32.xlu0 %v679, 1
        %v684 = vpop.permute.xlu0 %683
        %685 = vrot.lane.b32.xlu0 %v680, 1
        %v686 = vpop.permute.xlu0 %685
        %v687 = vsub.f32 %v678, %v682
        %v688 = vsub.f32 %v679, %v684
        %v689 = vsub.f32 %v680, %v686
        %v690 = vand.u32 2147483647, %v687
        %v691 = vand.u32 2147483647, %v688
        %v692 = vand.u32 2147483647, %v689
        %v693 = vmul.f32 %v690, %v612
        %v694 = vmul.f32 %v691, %v614
        %v695 = vmul.f32 %v692, %v616
        %v696 = vrot.slane %v678, 7
        %v697 = vrot.slane %v679, 7
        %v698 = vrot.slane %v680, 7
        %v699 = vsel %vm591, %v697, %v698
        %v700 = vsel %vm591, %v696, %v697
        %v701 = vsel %vm591, %v698, %v696
        %v702 = vsub.f32 %v678, %v701
        %v703 = vsub.f32 %v679, %v700
        %v704 = vsub.f32 %v680, %v699
        %v705 = vand.u32 2147483647, %v702
        %v706 = vand.u32 2147483647, %v703
        %v707 = vand.u32 2147483647, %v704
        %v708 = vmul.f32 %v705, %v669
        %v709 = vmul.f32 %v706, %v671
        %v710 = vmul.f32 %v707, %v673
        %v711 = vadd.f32 %v693, %v708
        %v712 = vadd.f32 %v694, %v709
        %v713 = vadd.f32 %v695, %v710
        %v714 = vadd.f32 %v711, %v712
        %v715 = vadd.f32 %v714, %v713
        %716 = vadd.xlane.f32.xlu0 %v715
        %v717 = vpop.xlane.xlu0 %716
        %v718 = vrot.slane %v717, 4
        %v719 = vadd.f32 %v717, %v718
        %v720 = vrot.slane %v719, 2
        %v721 = vadd.f32 %v719, %v720
        %v722 = vrot.slane %v721, 1
        %v723 = vadd.f32 %v721, %v722
        %s724 = vtos %v723
        %v725 = vld [vmem:[%s464] sm:$0xff]
        %v726 = vld [vmem:[%s464 + $0x8] sm:$0xff]
        %727 = vst.msk [vmem:[#allocation3] sm:$0xff] %vm550, %v725
        %728 = vst.msk [vmem:[#allocation3 + $0x8] sm:$0xff] %vm550, %v726
        %v729 = vld [vmem:[#allocation3] sm:$0xff]
        %v730 = vld [vmem:[#allocation3 + $0x8] sm:$0xff]
        %v731 = vld [vmem:[#allocation3 + $0x10] sm:$0xff]
        %732 = vrot.lane.b32.xlu0 %v729, 1
        %v733 = vpop.permute.xlu0 %732
        %734 = vrot.lane.b32.xlu0 %v730, 1
        %v735 = vpop.permute.xlu0 %734
        %736 = vrot.lane.b32.xlu0 %v731, 1
        %v737 = vpop.permute.xlu0 %736
        %v738 = vsub.f32 %v729, %v733
        %v739 = vsub.f32 %v730, %v735
        %v740 = vsub.f32 %v731, %v737
        %v741 = vand.u32 2147483647, %v738
        %v742 = vand.u32 2147483647, %v739
        %v743 = vand.u32 2147483647, %v740
        %v744 = vmul.f32 %v741, %v612
        %v745 = vmul.f32 %v742, %v614
        %v746 = vmul.f32 %v743, %v616
        %v747 = vrot.slane %v729, 7
        %v748 = vrot.slane %v730, 7
        %v749 = vrot.slane %v731, 7
        %v750 = vsel %vm591, %v748, %v749
        %v751 = vsel %vm591, %v747, %v748
        %v752 = vsel %vm591, %v749, %v747
        %v753 = vsub.f32 %v729, %v752
        %v754 = vsub.f32 %v730, %v751
        %v755 = vsub.f32 %v731, %v750
        %v756 = vand.u32 2147483647, %v753
        %v757 = vand.u32 2147483647, %v754
        %v758 = vand.u32 2147483647, %v755
        %v759 = vmul.f32 %v756, %v669
        %v760 = vmul.f32 %v757, %v671
        %v761 = vmul.f32 %v758, %v673
        %v762 = vadd.f32 %v744, %v759
        %v763 = vadd.f32 %v745, %v760
        %v764 = vadd.f32 %v746, %v761
        %v765 = vadd.f32 %v762, %v763
        %v766 = vadd.f32 %v765, %v764
        %767 = vadd.xlane.f32.xlu0 %v766
        %v768 = vpop.xlane.xlu0 %767
        %v769 = vrot.slane %v768, 4
        %v770 = vadd.f32 %v768, %v769
        %v771 = vrot.slane %v770, 2
        %v772 = vadd.f32 %v770, %v771
        %v773 = vrot.slane %v772, 1
        %v774 = vadd.f32 %v772, %v773
        %s775 = vtos %v774
        %v776 = vld [vmem:[%s437] sm:$0xff]
        %v777 = vld [vmem:[%s437 + $0x8] sm:$0xff]
        %v778 = vmul.f32 %v776, 0.299
        %v779 = vmul.f32 %v777, 0.299
        %s780 = scalar_lea.vmem %s437, 16 [#allocation9]
        %v781 = vld [vmem:[%s780] sm:$0xff]
        %v782 = vld [vmem:[%s780 + $0x8] sm:$0xff]
        %v783 = vmul.f32 %v781, 0.587
        %v784 = vmul.f32 %v782, 0.587
        %v785 = vadd.f32 %v778, %v783
        %v786 = vadd.f32 %v779, %v784
        %s787 = scalar_lea.vmem %s437, 32 [#allocation9]
        %v788 = vld [vmem:[%s787] sm:$0xff]
        %v789 = vld [vmem:[%s787 + $0x8] sm:$0xff]
        %v790 = vmul.f32 %v788, 0.114
        %v791 = vmul.f32 %v789, 0.114
        %v792 = vadd.f32 %v785, %v790
        %v793 = vadd.f32 %v786, %v791
        %794 = vst.msk [vmem:[#allocation2] sm:$0xff] %vm550, %v792
        %795 = vst.msk [vmem:[#allocation2 + $0x8] sm:$0xff] %vm550, %v793
        %v796 = vld [vmem:[#allocation2] sm:$0xff]
        %v797 = vld [vmem:[#allocation2 + $0x8] sm:$0xff]
        %v798 = vld [vmem:[#allocation2 + $0x10] sm:$0xff]
        %799 = vrot.lane.b32.xlu0 %v796, 1
        %v800 = vpop.permute.xlu0 %799
        %801 = vrot.lane.b32.xlu0 %v797, 1
        %v802 = vpop.permute.xlu0 %801
        %803 = vrot.lane.b32.xlu0 %v798, 1
        %v804 = vpop.permute.xlu0 %803
        %v805 = vsub.f32 %v796, %v800
        %v806 = vsub.f32 %v797, %v802
        %v807 = vsub.f32 %v798, %v804
        %v808 = vand.u32 2147483647, %v805
        %v809 = vand.u32 2147483647, %v806
        %v810 = vand.u32 2147483647, %v807
        %811 = vrot.lane.b32.xlu0 %v808, 1
        %v812 = vpop.permute.xlu0 %811
        %813 = vrot.lane.b32.xlu0 %v809, 1
        %v814 = vpop.permute.xlu0 %813
        %815 = vrot.lane.b32.xlu0 %v810, 1
        %v816 = vpop.permute.xlu0 %815
        %v817 = vadd.f32 %v808, %v812
        %v818 = vadd.f32 %v809, %v814
        %v819 = vadd.f32 %v810, %v816
        %820 = vrot.lane.b32.xlu0 %v808, 127
        %v821 = vpop.permute.xlu0 %820
        %822 = vrot.lane.b32.xlu0 %v809, 127
        %v823 = vpop.permute.xlu0 %822
        %824 = vrot.lane.b32.xlu0 %v810, 127
        %v825 = vpop.permute.xlu0 %824
        %v826 = vadd.f32 %v817, %v821
        %v827 = vadd.f32 %v818, %v823
        %v828 = vadd.f32 %v819, %v825
        %v829 = vrot.slane %v826, 7
        %v830 = vrot.slane %v827, 7
        %v831 = vrot.slane %v828, 7
        %v832 = vsel %vm591, %v830, %v831
        %v833 = vsel %vm591, %v829, %v830
        %v834 = vsel %vm591, %v831, %v829
        %v835 = vadd.f32 %v826, %v834
        %v836 = vadd.f32 %v827, %v833
        %v837 = vadd.f32 %v828, %v832
        %v838 = vrot.slane %v826, 1
        %v839 = vrot.slane %v827, 1
        %v840 = vrot.slane %v828, 1
        %v841 = vsel %vm601, %v839, %v840
        %v842 = vsel %vm601, %v838, %v839
        %v843 = vsel %vm601, %v840, %v838
        %v844 = vadd.f32 %v835, %v842
        %v845 = vadd.f32 %v836, %v841
        %v846 = vadd.f32 %v837, %v843
        %v847 = vmul.f32 %v844, -1.1111112
        %v848 = vmul.f32 %v845, -1.1111112
        %v849 = vmul.f32 %v846, -1.1111112
        %v850 = vmul.f32 %v847, 1.442695
        %v851 = vpow.pop %v850
        %v852 = vmul.f32 %v848, 1.442695
        %v853 = vpow.pop %v852
        %v854 = vmul.f32 %v849, 1.442695
        %v855 = vpow.pop %v854
        %v856 = vrot.slane %v796, 7
        %v857 = vrot.slane %v797, 7
        %v858 = vrot.slane %v798, 7
        %v859 = vsel %vm591, %v857, %v858
        %v860 = vsel %vm591, %v856, %v857
        %v861 = vsel %vm591, %v858, %v856
        %v862 = vsub.f32 %v796, %v861
        %v863 = vsub.f32 %v797, %v860
        %v864 = vsub.f32 %v798, %v859
        %v865 = vand.u32 2147483647, %v862
        %v866 = vand.u32 2147483647, %v863
        %v867 = vand.u32 2147483647, %v864
        %868 = vrot.lane.b32.xlu0 %v865, 1
        %v869 = vpop.permute.xlu0 %868
        %870 = vrot.lane.b32.xlu0 %v866, 1
        %v871 = vpop.permute.xlu0 %870
        %872 = vrot.lane.b32.xlu0 %v867, 1
        %v873 = vpop.permute.xlu0 %872
        %v874 = vadd.f32 %v865, %v869
        %v875 = vadd.f32 %v866, %v871
        %v876 = vadd.f32 %v867, %v873
        %877 = vrot.lane.b32.xlu0 %v865, 127
        %v878 = vpop.permute.xlu0 %877
        %879 = vrot.lane.b32.xlu0 %v866, 127
        %v880 = vpop.permute.xlu0 %879
        %881 = vrot.lane.b32.xlu0 %v867, 127
        %v882 = vpop.permute.xlu0 %881
        %v883 = vadd.f32 %v874, %v878
        %v884 = vadd.f32 %v875, %v880
        %v885 = vadd.f32 %v876, %v882
        %v886 = vrot.slane %v883, 7
        %v887 = vrot.slane %v884, 7
        %v888 = vrot.slane %v885, 7
        %v889 = vsel %vm591, %v887, %v888
        %v890 = vsel %vm591, %v886, %v887
        %v891 = vsel %vm591, %v888, %v886
        %v892 = vadd.f32 %v883, %v891
        %v893 = vadd.f32 %v884, %v890
        %v894 = vadd.f32 %v885, %v889
        %v895 = vrot.slane %v883, 1
        %v896 = vrot.slane %v884, 1
        %v897 = vrot.slane %v885, 1
        %v898 = vsel %vm601, %v896, %v897
        %v899 = vsel %vm601, %v895, %v896
        %v900 = vsel %vm601, %v897, %v895
        %v901 = vadd.f32 %v892, %v899
        %v902 = vadd.f32 %v893, %v898
        %v903 = vadd.f32 %v894, %v900
        %v904 = vmul.f32 %v901, -1.1111112
        %v905 = vmul.f32 %v902, -1.1111112
        %v906 = vmul.f32 %v903, -1.1111112
        %v907 = vmul.f32 %v904, 1.442695
        %v908 = vpow.pop %v907
        %v909 = vmul.f32 %v905, 1.442695
        %v910 = vpow.pop %v909
        %v911 = vmul.f32 %v906, 1.442695
        %v912 = vpow.pop %v911
        %v913 = vld [vmem:[%s455] sm:$0xff]
        %v914 = vld [vmem:[%s455 + $0x8] sm:$0xff]
        %915 = vst.msk [vmem:[#allocation3] sm:$0xff] %vm550, %v913
        %916 = vst.msk [vmem:[#allocation3 + $0x8] sm:$0xff] %vm550, %v914
        %v917 = vld [vmem:[#allocation3] sm:$0xff]
        %v918 = vld [vmem:[#allocation3 + $0x8] sm:$0xff]
        %v919 = vld [vmem:[#allocation3 + $0x10] sm:$0xff]
        %920 = vrot.lane.b32.xlu0 %v917, 1
        %v921 = vpop.permute.xlu0 %920
        %922 = vrot.lane.b32.xlu0 %v918, 1
        %v923 = vpop.permute.xlu0 %922
        %924 = vrot.lane.b32.xlu0 %v919, 1
        %v925 = vpop.permute.xlu0 %924
        %v926 = vsub.f32 %v917, %v921
        %v927 = vsub.f32 %v918, %v923
        %v928 = vsub.f32 %v919, %v925
        %v929 = vand.u32 2147483647, %v926
        %v930 = vand.u32 2147483647, %v927
        %v931 = vand.u32 2147483647, %v928
        %v932 = vmul.f32 %v929, %v851
        %v933 = vmul.f32 %v930, %v853
        %v934 = vmul.f32 %v931, %v855
        %v935 = vrot.slane %v917, 7
        %v936 = vrot.slane %v918, 7
        %v937 = vrot.slane %v919, 7
        %v938 = vsel %vm591, %v936, %v937
        %v939 = vsel %vm591, %v935, %v936
        %v940 = vsel %vm591, %v937, %v935
        %v941 = vsub.f32 %v917, %v940
        %v942 = vsub.f32 %v918, %v939
        %v943 = vsub.f32 %v919, %v938
        %v944 = vand.u32 2147483647, %v941
        %v945 = vand.u32 2147483647, %v942
        %v946 = vand.u32 2147483647, %v943
        %v947 = vmul.f32 %v944, %v908
        %v948 = vmul.f32 %v945, %v910
        %v949 = vmul.f32 %v946, %v912
        %v950 = vadd.f32 %v932, %v947
        %v951 = vadd.f32 %v933, %v948
        %v952 = vadd.f32 %v934, %v949
        %v953 = vadd.f32 %v950, %v951
        %v954 = vadd.f32 %v953, %v952
        %955 = vadd.xlane.f32.xlu0 %v954
        %v956 = vpop.xlane.xlu0 %955
        %v957 = vrot.slane %v956, 4
        %v958 = vadd.f32 %v956, %v957
        %v959 = vrot.slane %v958, 2
        %v960 = vadd.f32 %v958, %v959
        %v961 = vrot.slane %v960, 1
        %v962 = vadd.f32 %v960, %v961
        %s963 = vtos %v962
        %v964 = vld [vmem:[%s428] sm:$0xff]
        %v965 = vld [vmem:[%s428 + $0x8] sm:$0xff]
        %v966 = vld [vmem:[%s428 + $0x10] sm:$0xff]
        %v967 = vld [vmem:[%s428 + $0x18] sm:$0xff]
        %v968 = vld [vmem:[%s428 + $0x20] sm:$0xff]
        %v969 = vld [vmem:[%s428 + $0x28] sm:$0xff]
        %v970 = vld [vmem:[%s446] sm:$0xff]
        %v971 = vld [vmem:[%s446 + $0x8] sm:$0xff]
        %v972 = vmul.f32 %v964, %v970
        %v973 = vmul.f32 %v965, %v971
        %v974 = vmul.f32 %v966, %v970
        %v975 = vmul.f32 %v967, %v971
        %v976 = vmul.f32 %v968, %v970
        %v977 = vmul.f32 %v969, %v971
        %v978 = vld [vmem:[%s410] sm:$0xff]
        %v979 = vld [vmem:[%s410 + $0x8] sm:$0xff]
        %v980 = vld [vmem:[%s410 + $0x10] sm:$0xff]
        %v981 = vld [vmem:[%s410 + $0x18] sm:$0xff]
        %v982 = vld [vmem:[%s410 + $0x20] sm:$0xff]
        %v983 = vld [vmem:[%s410 + $0x28] sm:$0xff]
        %v984 = vsub.f32 %v972, %v978
        %v985 = vsub.f32 %v973, %v979
        %v986 = vsub.f32 %v974, %v980
        %v987 = vsub.f32 %v975, %v981
        %v988 = vsub.f32 %v976, %v982
        %v989 = vsub.f32 %v977, %v983
        %v990 = vand.u32 2147483647, %v984
        %v991 = vand.u32 2147483647, %v985
        %v992 = vand.u32 2147483647, %v986
        %v993 = vand.u32 2147483647, %v987
        %v994 = vand.u32 2147483647, %v988
        %v995 = vand.u32 2147483647, %v989
        %v996 = vsel %vm550, %v990, 0.0
        %v997 = vsel %vm550, %v991, 0.0
        %v998 = vadd.f32 %v996, %v997
        %v999 = vsel %vm550, %v992, 0.0
        %v1000 = vadd.f32 %v998, %v999
        %v1001 = vsel %vm550, %v993, 0.0
        %v1002 = vadd.f32 %v1000, %v1001
        %v1003 = vsel %vm550, %v994, 0.0
        %v1004 = vadd.f32 %v1002, %v1003
        %v1005 = vsel %vm550, %v995, 0.0
        %v1006 = vadd.f32 %v1004, %v1005
        %1007 = vadd.xlane.f32.xlu0 %v1006
        %v1008 = vpop.xlane.xlu0 %1007
        %v1009 = vrot.slane %v1008, 4
        %v1010 = vadd.f32 %v1008, %v1009
        %v1011 = vrot.slane %v1010, 2
        %v1012 = vadd.f32 %v1010, %v1011
        %v1013 = vrot.slane %v1012, 1
        %v1014 = vadd.f32 %v1012, %v1013
        %s1015 = vtos %v1014
        %v1016 = vld [vmem:[%s437] sm:$0xff]
        %v1017 = vld [vmem:[%s437 + $0x8] sm:$0xff]
        %v1018 = vld [vmem:[%s437 + $0x10] sm:$0xff]
        %v1019 = vld [vmem:[%s437 + $0x18] sm:$0xff]
        %v1020 = vld [vmem:[%s437 + $0x20] sm:$0xff]
        %v1021 = vld [vmem:[%s437 + $0x28] sm:$0xff]
        %v1022 = vld [vmem:[%s455] sm:$0xff]
        %v1023 = vld [vmem:[%s455 + $0x8] sm:$0xff]
        %v1024 = vmul.f32 %v1016, %v1022
        %v1025 = vmul.f32 %v1017, %v1023
        %v1026 = vmul.f32 %v1018, %v1022
        %v1027 = vmul.f32 %v1019, %v1023
        %v1028 = vmul.f32 %v1020, %v1022
        %v1029 = vmul.f32 %v1021, %v1023
        %v1030 = vld [vmem:[%s419] sm:$0xff]
        %v1031 = vld [vmem:[%s419 + $0x8] sm:$0xff]
        %v1032 = vld [vmem:[%s419 + $0x10] sm:$0xff]
        %v1033 = vld [vmem:[%s419 + $0x18] sm:$0xff]
        %v1034 = vld [vmem:[%s419 + $0x20] sm:$0xff]
        %v1035 = vld [vmem:[%s419 + $0x28] sm:$0xff]
        %v1036 = vsub.f32 %v1024, %v1030
        %v1037 = vsub.f32 %v1025, %v1031
        %v1038 = vsub.f32 %v1026, %v1032
        %v1039 = vsub.f32 %v1027, %v1033
        %v1040 = vsub.f32 %v1028, %v1034
        %v1041 = vsub.f32 %v1029, %v1035
        %v1042 = vand.u32 2147483647, %v1036
        %v1043 = vand.u32 2147483647, %v1037
        %v1044 = vand.u32 2147483647, %v1038
        %v1045 = vand.u32 2147483647, %v1039
        %v1046 = vand.u32 2147483647, %v1040
        %v1047 = vand.u32 2147483647, %v1041
        %v1048 = vsel %vm550, %v1042, 0.0
        %v1049 = vsel %vm550, %v1043, 0.0
        %v1050 = vadd.f32 %v1048, %v1049
        %v1051 = vsel %vm550, %v1044, 0.0
        %v1052 = vadd.f32 %v1050, %v1051
        %v1053 = vsel %vm550, %v1045, 0.0
        %v1054 = vadd.f32 %v1052, %v1053
        %v1055 = vsel %vm550, %v1046, 0.0
        %v1056 = vadd.f32 %v1054, %v1055
        %v1057 = vsel %vm550, %v1047, 0.0
        %v1058 = vadd.f32 %v1056, %v1057
        %1059 = vadd.xlane.f32.xlu0 %v1058
        %v1060 = vpop.xlane.xlu0 %1059
        %v1061 = vrot.slane %v1060, 4
        %v1062 = vadd.f32 %v1060, %v1061
        %v1063 = vrot.slane %v1062, 2
        %v1064 = vadd.f32 %v1062, %v1063
        %v1065 = vrot.slane %v1064, 1
        %v1066 = vadd.f32 %v1064, %v1065
        %s1067 = vtos %v1066
        %v1068 = vmul.f32 %v1016, %v970
        %v1069 = vmul.f32 %v1017, %v971
        %v1070 = vmul.f32 %v1018, %v970
        %v1071 = vmul.f32 %v1019, %v971
        %v1072 = vmul.f32 %v1020, %v970
        %v1073 = vmul.f32 %v1021, %v971
        %v1074 = vsub.f32 %v1068, %v978
        %v1075 = vsub.f32 %v1069, %v979
        %v1076 = vsub.f32 %v1070, %v980
        %v1077 = vsub.f32 %v1071, %v981
        %v1078 = vsub.f32 %v1072, %v982
        %v1079 = vsub.f32 %v1073, %v983
        %v1080 = vand.u32 2147483647, %v1074
        %v1081 = vand.u32 2147483647, %v1075
        %v1082 = vand.u32 2147483647, %v1076
        %v1083 = vand.u32 2147483647, %v1077
        %v1084 = vand.u32 2147483647, %v1078
        %v1085 = vand.u32 2147483647, %v1079
        %v1086 = vsel %vm550, %v1080, 0.0
        %v1087 = vsel %vm550, %v1081, 0.0
        %v1088 = vadd.f32 %v1086, %v1087
        %v1089 = vsel %vm550, %v1082, 0.0
        %v1090 = vadd.f32 %v1088, %v1089
        %v1091 = vsel %vm550, %v1083, 0.0
        %v1092 = vadd.f32 %v1090, %v1091
        %v1093 = vsel %vm550, %v1084, 0.0
        %v1094 = vadd.f32 %v1092, %v1093
        %v1095 = vsel %vm550, %v1085, 0.0
        %v1096 = vadd.f32 %v1094, %v1095
        %1097 = vadd.xlane.f32.xlu0 %v1096
        %v1098 = vpop.xlane.xlu0 %1097
        %v1099 = vrot.slane %v1098, 4
        %v1100 = vadd.f32 %v1098, %v1099
        %v1101 = vrot.slane %v1100, 2
        %v1102 = vadd.f32 %v1100, %v1101
        %v1103 = vrot.slane %v1102, 1
        %v1104 = vadd.f32 %v1102, %v1103
        %s1105 = vtos %v1104
        %v1106 = vmul.f32 %v964, %v1022
        %v1107 = vmul.f32 %v965, %v1023
        %v1108 = vmul.f32 %v966, %v1022
        %v1109 = vmul.f32 %v967, %v1023
        %v1110 = vmul.f32 %v968, %v1022
        %v1111 = vmul.f32 %v969, %v1023
        %v1112 = vsub.f32 %v1106, %v1030
        %v1113 = vsub.f32 %v1107, %v1031
        %v1114 = vsub.f32 %v1108, %v1032
        %v1115 = vsub.f32 %v1109, %v1033
        %v1116 = vsub.f32 %v1110, %v1034
        %v1117 = vsub.f32 %v1111, %v1035
        %v1118 = vand.u32 2147483647, %v1112
        %v1119 = vand.u32 2147483647, %v1113
        %v1120 = vand.u32 2147483647, %v1114
        %v1121 = vand.u32 2147483647, %v1115
        %v1122 = vand.u32 2147483647, %v1116
        %v1123 = vand.u32 2147483647, %v1117
        %v1124 = vsel %vm550, %v1118, 0.0
        %v1125 = vsel %vm550, %v1119, 0.0
        %v1126 = vadd.f32 %v1124, %v1125
        %v1127 = vsel %vm550, %v1120, 0.0
        %v1128 = vadd.f32 %v1126, %v1127
        %v1129 = vsel %vm550, %v1121, 0.0
        %v1130 = vadd.f32 %v1128, %v1129
        %v1131 = vsel %vm550, %v1122, 0.0
        %v1132 = vadd.f32 %v1130, %v1131
        %v1133 = vsel %vm550, %v1123, 0.0
        %v1134 = vadd.f32 %v1132, %v1133
        %1135 = vadd.xlane.f32.xlu0 %v1134
        %v1136 = vpop.xlane.xlu0 %1135
        %v1137 = vrot.slane %v1136, 4
        %v1138 = vadd.f32 %v1136, %v1137
        %v1139 = vrot.slane %v1138, 2
        %v1140 = vadd.f32 %v1138, %v1139
        %v1141 = vrot.slane %v1140, 1
        %v1142 = vadd.f32 %v1140, %v1141
        %s1143 = vtos %v1142
        %v1144 = vsub.f32 %v964, %v1016
        %v1145 = vsub.f32 %v965, %v1017
        %v1146 = vsub.f32 %v966, %v1018
        %v1147 = vsub.f32 %v967, %v1019
        %v1148 = vsub.f32 %v968, %v1020
        %v1149 = vsub.f32 %v969, %v1021
        %v1150 = vand.u32 2147483647, %v1144
        %v1151 = vand.u32 2147483647, %v1145
        %v1152 = vand.u32 2147483647, %v1146
        %v1153 = vand.u32 2147483647, %v1147
        %v1154 = vand.u32 2147483647, %v1148
        %v1155 = vand.u32 2147483647, %v1149
        %v1156 = vsel %vm550, %v1150, 0.0
        %v1157 = vsel %vm550, %v1151, 0.0
        %v1158 = vadd.f32 %v1156, %v1157
        %v1159 = vsel %vm550, %v1152, 0.0
        %v1160 = vadd.f32 %v1158, %v1159
        %v1161 = vsel %vm550, %v1153, 0.0
        %v1162 = vadd.f32 %v1160, %v1161
        %v1163 = vsel %vm550, %v1154, 0.0
        %v1164 = vadd.f32 %v1162, %v1163
        %v1165 = vsel %vm550, %v1155, 0.0
        %v1166 = vadd.f32 %v1164, %v1165
        %1167 = vadd.xlane.f32.xlu0 %v1166
        %v1168 = vpop.xlane.xlu0 %1167
        %v1169 = vrot.slane %v1168, 4
        %v1170 = vadd.f32 %v1168, %v1169
        %v1171 = vrot.slane %v1170, 2
        %v1172 = vadd.f32 %v1170, %v1171
        %v1173 = vrot.slane %v1172, 1
        %v1174 = vadd.f32 %v1172, %v1173
        %s1175 = vtos %v1174
        %v1176 = vld [vmem:[%s464] sm:$0xff]
        %v1177 = vld [vmem:[%s464 + $0x8] sm:$0xff]
        %v1178 = vmul.f32 %v964, %v1176
        %v1179 = vmul.f32 %v965, %v1177
        %v1180 = vmul.f32 %v966, %v1176
        %v1181 = vmul.f32 %v967, %v1177
        %v1182 = vmul.f32 %v968, %v1176
        %v1183 = vmul.f32 %v969, %v1177
        %v1184 = vsub.f32 %v1178, %v1030
        %v1185 = vsub.f32 %v1179, %v1031
        %v1186 = vsub.f32 %v1180, %v1032
        %v1187 = vsub.f32 %v1181, %v1033
        %v1188 = vsub.f32 %v1182, %v1034
        %v1189 = vsub.f32 %v1183, %v1035
        %v1190 = vand.u32 2147483647, %v1184
        %v1191 = vand.u32 2147483647, %v1185
        %v1192 = vand.u32 2147483647, %v1186
        %v1193 = vand.u32 2147483647, %v1187
        %v1194 = vand.u32 2147483647, %v1188
        %v1195 = vand.u32 2147483647, %v1189
        %v1196 = vsel %vm550, %v1190, 0.0
        %v1197 = vsel %vm550, %v1191, 0.0
        %v1198 = vadd.f32 %v1196, %v1197
        %v1199 = vsel %vm550, %v1192, 0.0
        %v1200 = vadd.f32 %v1198, %v1199
        %v1201 = vsel %vm550, %v1193, 0.0
        %v1202 = vadd.f32 %v1200, %v1201
        %v1203 = vsel %vm550, %v1194, 0.0
        %v1204 = vadd.f32 %v1202, %v1203
        %v1205 = vsel %vm550, %v1195, 0.0
        %v1206 = vadd.f32 %v1204, %v1205
        %1207 = vadd.xlane.f32.xlu0 %v1206
        %v1208 = vpop.xlane.xlu0 %1207
        %v1209 = vrot.slane %v1208, 4
        %v1210 = vadd.f32 %v1208, %v1209
        %v1211 = vrot.slane %v1210, 2
        %v1212 = vadd.f32 %v1210, %v1211
        %v1213 = vrot.slane %v1212, 1
        %v1214 = vadd.f32 %v1212, %v1213
        %s1215 = vtos %v1214
        %v1216 = vlaneseq
        %v1217 = vand.u32 %v1216, 127
        %vm1218 = vcmp.eq.s32.totalorder %v1217, 0
        %v1219 = vstv %s1015
        %v1220 = vsel %vm1218, %v1219, 0.0
        %vm1221 = vcmp.eq.s32.totalorder %v1217, 1
        %v1222 = vstv %s1067
        %v1223 = vsel %vm1221, %v1222, %v1220
        %vm1224 = vcmp.eq.s32.totalorder %v1217, 2
        %v1225 = vstv %s1105
        %v1226 = vsel %vm1224, %v1225, %v1223
        %vm1227 = vcmp.eq.s32.totalorder %v1217, 3
        %v1228 = vstv %s1143
        %v1229 = vsel %vm1227, %v1228, %v1226
        %vm1230 = vcmp.eq.s32.totalorder %v1217, 4
        %v1231 = vstv %s1175
        %v1232 = vsel %vm1230, %v1231, %v1229
        %vm1233 = vcmp.eq.s32.totalorder %v1217, 5
        %v1234 = vstv %s724
        %v1235 = vsel %vm1233, %v1234, %v1232
        %vm1236 = vcmp.eq.s32.totalorder %v1217, 6
        %v1237 = vstv %s963
        %v1238 = vsel %vm1236, %v1237, %v1235
        %vm1239 = vcmp.eq.s32.totalorder %v1217, 7
        %v1240 = vstv %s1215
        %v1241 = vsel %vm1239, %v1240, %v1238
        %vm1242 = vcmp.eq.s32.totalorder %v1217, 8
        %v1243 = vstv %s775
        %v1244 = vsel %vm1242, %v1243, %v1241
        %1245 = vst [vmem:[%s525] sm:$0x1] %v1244
        %p1246 = scmp.lt.s32.totalorder %s30, 1
        %s1247 = scalar_select %p1246, %s30, 1
        %s1248 = scalar_lea.vmem %s7, %s1247
        // Predicated region
        $region77: #{retinex_loss_pallas.1} parent=47 // pred_check
          %p1249 = pneg %p230
        $region78: #{retinex_loss_pallas.1} parent=47 // pred_check_branch
          %1251 = sbr.rel (%p1249) target = $region80
        $region79: #{retinex_loss_pallas.1} parent=47 // pred_region
          _
        $region80: #{retinex_loss_pallas.1} parent=47 // pred_fallthru
          _
      $region48: #{retinex_loss_pallas.1} parent=5 // pred_fallthru
        _
      %p1252 = scmp.le.s32.totalorder 2, %s25
      // Predicated region
      $region81: #{retinex_loss_pallas.1} parent=5 // pred_check
        %p1253 = pneg %p1252
      $region82: #{retinex_loss_pallas.1} parent=5 // pred_check_branch
        %1255 = sbr.rel (%p1253) target = $region84
      $region83: #{retinex_loss_pallas.1} parent=5 // pred_region
        %s1256 = ssub.s32 %s25, 2
        // Predicated region
        $region85: #{retinex_loss_pallas.1} parent=83 // pred_check
          %p1257 = pneg %p236
        $region86: #{retinex_loss_pallas.1} parent=83 // pred_check_branch
          %1259 = sbr.rel (%p1257) target = $region88
        $region87: #{retinex_loss_pallas.1} parent=83 // pred_region
          %p1260 = scmp.lt.s32.totalorder %s31, 1
          %s1261 = scalar_select %p1260, %s31, 1
          %s1262 = scalar_lea.vmem %s7, %s1261
        $region88: #{retinex_loss_pallas.1} parent=83 // pred_fallthru
          _
      $region84: #{retinex_loss_pallas.1} parent=5 // pred_fallthru
        _
    $region6: #{retinex_loss_pallas.1} parent=1 // loop_footer
      %s29 = sadd.s32 1, %s25
    $region7: #{retinex_loss_pallas.1} parent=1 // loop_footer_branch
      %24 = sbr.rel target = $region3
    $region8: #{retinex_loss_pallas.1} parent=1 // loop_exit
      _
    %1263 = vsyncpa [#allocation5], 1
    %s1264 = scalar_lea.sflag [#allocation5], 1
    %1265 = vsyncpa %s1264, 1
    %1266 = vsyncpa [#allocation7], 1
    %s1267 = scalar_lea.sflag [#allocation7], 1
    %1268 = vsyncpa %s1267, 1
    %1269 = vsyncpa [#allocation10], 1
    %s1270 = scalar_lea.sflag [#allocation10], 1
    %1271 = vsyncpa %s1270, 1
    %1272 = vsyncpa [#allocation13], 1
    %s1273 = scalar_lea.sflag [#allocation13], 1
    %1274 = vsyncpa %s1273, 1

</llo_original>
